<compile_context>
chip_gen: v7x
topology: tpu7x:2x2x1
jax: 0.10.0
libtpu: 0.0.40
codegen_flags: <defaults>
</compile_context>

<pallas_src>
import jax
import jax.numpy as jnp
from jax.experimental import pallas as pl
from jax.experimental.pallas import tpu as pltpu


# --------------------------------------------------------------------------------------
# Kernels
# --------------------------------------------------------------------------------------
def _epilogue(h_f32, b1_ref, w2_ref, b2_ref, o_ref):
    """fc1 bias + ReLU + fc2 (VPU mul + XLU lane reduce) + exact sigmoid."""
    h = jnp.maximum(h_f32 + b1_ref[...], 0.0)
    # TODO(synk): dropout(p=0.2) is identity in eval mode; train-mode PRNG masking is
    # intentionally not implemented here.
    logits = jnp.sum(h * w2_ref[...], axis=-1, keepdims=True) + b2_ref[0, 0]
    o_ref[...] = (1.0 / (1.0 + jnp.exp(-logits))).astype(o_ref.dtype)


def _as_bf16(x):
    return x if x.dtype == jnp.bfloat16 else x.astype(jnp.bfloat16)


def _mlp_fused_kernel(x_ref, w1_ref, b1_ref, w2_ref, b2_ref, o_ref):
    """Collapsed-K fast path. Grid: (batch tiles,) [parallel]. No scratch."""
    h = jnp.dot(_as_bf16(x_ref[...]), w1_ref[...], preferred_element_type=jnp.float32)
    _epilogue(h, b1_ref, w2_ref, b2_ref, o_ref)


def _mlp_acc_kernel(x_ref, w1_ref, b1_ref, w2_ref, b2_ref, o_ref, h_acc):
    """K-split path. Grid: (batch tiles [parallel], fc1 K steps [arbitrary]).

    h_acc: VMEM scratch (tb, H) f32 — fc1 accumulator across k steps
    (write-then-accumulate; no zero-fill pass).
    """
    k = pl.program_id(1)
    partial = jnp.dot(_as_bf16(x_ref[...]), w1_ref[...],
                      preferred_element_type=jnp.float32)

    @pl.when(k == 0)
    def _():
        h_acc[...] = partial

    @pl.when(k > 0)
    def _():
        h_acc[...] += partial

    @pl.when(k == pl.num_programs(1) - 1)
    def _():
        _epilogue(h_acc[...], b1_ref, w2_ref, b2_ref, o_ref)


# --------------------------------------------------------------------------------------
# Tiling / VMEM budgeting
# --------------------------------------------------------------------------------------
_VMEM_TARGET = 48 << 20  # resident-footprint cap; v7x has only 64 MiB VMEM per TC


def _footprint_bytes(tb, tk, F, H, x_itemsize, multi_k):
    f = 2 * tb * tk * x_itemsize       # x tile, double-buffered
    f += 2 * tk * H * 2                # W1 tile (bf16), double-buffered
    f += 2 * 2 * 8 * H * 4             # b1 + w2 ((1,H) blocks pad to 8 sublanes), 2 bufs
    f += 2 * tb * 128 * 4              # output (1-wide lane pads to 128), 2 bufs
    if multi_k:
        f += tb * H * 4                # fc1 accumulator scratch
    return f


def _pick_tb(B):
    # >=2 batch tiles once B >= 128 (lets v7x shard the parallel axis over both TCs);
    # up to 512-row tiles at large B to amortize the ~0.35us per-grid-step overhead.
    if B < 128:
        return B
    for cand in (512, 256, 128, 64, 32, 16, 8):
        if B % cand == 0 and B // cand >= 2:
            return cand
    return B


def _pick_tiles(B, F, H, x_itemsize):
    tb = _pick_tb(B)
    while True:
        # Prefer the collapsed-K fast path (tk == F always satisfies the layout rules).
        if _footprint_bytes(tb, F, F, H, x_itemsize, False) <= _VMEM_TARGET:
            return tb, F
        # Otherwise split K: largest multiple-of-128 divisor of F that fits the budget.
        for tk in (4096, 2048, 1024, 512, 256, 128):
            if F % tk == 0 and _footprint_bytes(tb, tk, F, H, x_itemsize, True) <= _VMEM_TARGET:
                return tb, tk
        # No K split fits at this tb: shrink the batch tile (keep it a divisor of B).
        smaller = None
        for cand in (256, 128, 64, 32, 16, 8):
            if cand < tb and B % cand == 0:
                smaller = cand
                break
        if smaller is None:
            # Last resort: smallest legal K split (vmem_limit_bytes is raised to match).
            for tk in (128, 256, 512, 1024, 2048, 4096):
                if F % tk == 0:
                    return tb, tk
            return tb, F
        tb = smaller


# --------------------------------------------------------------------------------------
# Public API
# --------------------------------------------------------------------------------------
def prepare_params(w1, b1, w2, b2):
    """One-time conversion to kernel layout/dtypes. Call ONCE at init, not per forward.

    Expects w1 of shape (n_features, hidden) (i.e. torch weight already transposed),
    w2 of shape (hidden, 1) or (1, hidden).
    """
    H = w1.shape[-1]
    return (jnp.asarray(w1, jnp.bfloat16),                      # W1 streamed in bf16
            jnp.asarray(b1, jnp.float32).reshape(1, H),         # b1 resident (1,H) f32
            jnp.asarray(w2, jnp.float32).reshape(1, H),         # w2 row vector, f32 (4 KiB)
            jnp.asarray(b2, jnp.float32).reshape(1, 1))          # b2 scalar -> SMEM


def mlp_forward(x, w1, b1, w2, b2, *, tb=None, tk=None):
    """sigmoid(relu(x @ W1 + b1) @ w2 + b2); dropout is eval-mode identity."""
    B, F = x.shape
    H = w1.shape[-1]

    # Accept either prepare_params() output or raw f32 params (the latter pays an extra
    # per-call HBM pass over W1 — prefer prepare_params()).
    if w1.dtype != jnp.bfloat16:
        w1 = w1.astype(jnp.bfloat16)
    b1 = jnp.asarray(b1, jnp.float32).reshape(1, H)
    w2 = jnp.asarray(w2, jnp.float32).reshape(1, H)
    b2 = jnp.asarray(b2, jnp.float32).reshape(1, 1)

    x_itemsize = jnp.dtype(x.dtype).itemsize
    auto_tb, auto_tk = _pick_tiles(B, F, H, x_itemsize)
    tb = auto_tb if tb is None else tb
    tk = auto_tk if tk is None else tk
    # TODO(synk): batch/feature sizes that are not multiples of the chosen tiles would
    # need masked edge tiles; rejected here instead.
    assert B % tb == 0, f"batch {B} must be a multiple of the batch tile {tb}"
    assert F % tk == 0, f"n_features {F} must be a multiple of the K tile {tk}"

    multi_k = (tk != F)
    fp = _footprint_bytes(tb, tk, F, H, x_itemsize, multi_k)
    vmem_limit = int(min(max(fp + (8 << 20), 16 << 20), 96 << 20))

    if not multi_k:
        # Single-K fast path: no accumulator scratch, no phase branches.
        return pl.pallas_call(
            _mlp_fused_kernel,
            out_shape=jax.ShapeDtypeStruct((B, 1), jnp.float32),
            grid_spec=pltpu.PrefetchScalarGridSpec(
                num_scalar_prefetch=0,
                grid=(B // tb,),
                in_specs=[
                    pl.BlockSpec((tb, F), lambda i: (i, 0)),          # x tile
                    pl.BlockSpec((F, H), lambda i: (0, 0)),           # W1 (resident, bf16)
                    pl.BlockSpec((1, H), lambda i: (0, 0)),           # b1 (resident)
                    pl.BlockSpec((1, H), lambda i: (0, 0)),           # w2 row (resident)
                    pl.BlockSpec(memory_space=pltpu.MemorySpace.SMEM),  # b2 scalar
                ],
                out_specs=pl.BlockSpec((tb, 1), lambda i: (i, 0)),
            ),
            compiler_params=pltpu.CompilerParams(
                dimension_semantics=("parallel",),
                vmem_limit_bytes=vmem_limit),
        )(x, w1, b1, w2, b2)

    return pl.pallas_call(
        _mlp_acc_kernel,
        out_shape=jax.ShapeDtypeStruct((B, 1), jnp.float32),
        grid_spec=pltpu.PrefetchScalarGridSpec(
            num_scalar_prefetch=0,
            grid=(B // tb, F // tk),
            in_specs=[
                pl.BlockSpec((tb, tk), lambda i, k: (i, k)),          # x tile
                pl.BlockSpec((tk, H), lambda i, k: (k, 0)),           # W1 tile (bf16)
                pl.BlockSpec((1, H), lambda i, k: (0, 0)),            # b1 (resident)
                pl.BlockSpec((1, H), lambda i, k: (0, 0)),            # w2 row (resident)
                pl.BlockSpec(memory_space=pltpu.MemorySpace.SMEM),    # b2 scalar
            ],
            out_specs=pl.BlockSpec((tb, 1), lambda i, k: (i, 0)),
            scratch_shapes=[pltpu.VMEM((tb, H), jnp.float32)],
        ),
        compiler_params=pltpu.CompilerParams(
            dimension_semantics=("parallel", "arbitrary"),
            vmem_limit_bytes=vmem_limit),
    )(x, w1, b1, w2, b2)


def init_params(key, n_features, hidden=1024, out=1):
    """Deterministic init mimicking torch.nn.Linear (uniform +/- 1/sqrt(fan_in)).

    Returns W1 as (n_features, hidden) — already in the kernel's (in, out) layout.
    """
    k1, k2, k3, k4 = jax.random.split(key, 4)
    lim1 = 1.0 / jnp.sqrt(n_features)
    lim2 = 1.0 / jnp.sqrt(hidden)
    w1 = jax.random.uniform(k1, (n_features, hidden), jnp.float32, -lim1, lim1)
    b1 = jax.random.uniform(k2, (1, hidden), jnp.float32, -lim1, lim1)
    w2 = jax.random.uniform(k3, (hidden, out), jnp.float32, -lim2, lim2)
    b2 = jax.random.uniform(k4, (1, out), jnp.float32, -lim2, lim2)
    return w1, b1, w2, b2


if __name__ == "__main__":
    # Small, module-consistent shapes: batch=8, n_features=512, hidden=1024, out=1.
    B, F, H = 8, 512, 1024
    key = jax.random.PRNGKey(0)
    kx, kp = jax.random.split(key)
    x = jax.random.normal(kx, (B, F), jnp.float32)
    w1, b1, w2, b2 = init_params(kp, F, H, 1)

    # One-time parameter prep (bf16 W1 etc.) hoisted out of the forward.
    pw1, pb1, pw2, pb2 = prepare_params(w1, b1, w2, b2)

    out = jax.block_until_ready(mlp_forward(x, pw1, pb1, pw2, pb2))
    assert out.shape == (B, 1)

    # Reference 1: numerics-matched reference (bf16 W1, f32 accumulate/epilogue).
    h_ref = jnp.maximum(
        jnp.dot(x.astype(jnp.bfloat16), pw1, preferred_element_type=jnp.float32) + pb1,
        0.0)
    logits_ref = jnp.sum(h_ref * pw2, axis=-1, keepdims=True) + pb2
    ref_bf16 = jax.nn.sigmoid(logits_ref)
    assert jnp.allclose(out, ref_bf16, atol=2e-3, rtol=2e-3)

    # Reference 2: full-f32 eval-mode forward (looser tolerance: bf16 weight quant).
    ref_f32 = jax.nn.sigmoid(jnp.maximum(x @ w1 + b1, 0.0) @ w2 + b2)
    assert jnp.allclose(out, ref_f32, atol=2e-2, rtol=2e-2)

    # Exercise the K-split (accumulator) path as well.
    out_ksplit = jax.block_until_ready(mlp_forward(x, pw1, pb1, pw2, pb2, tb=8, tk=256))
    assert jnp.allclose(out_ksplit, out, atol=2e-3, rtol=2e-3)

    # bf16 activations are accepted directly (no in-kernel cast, halved x DMA).
    out_bf16x = jax.block_until_ready(
        mlp_forward(x.astype(jnp.bfloat16), pw1, pb1, pw2, pb2))
    assert jnp.allclose(out_bf16x, out, atol=2e-3, rtol=2e-3)

    print("KERNEL_OK")
</pallas_src>

<mosaic_0001>
module attributes {stable_mosaic.version = 11 : i64} {
  func.func @_mlp_fused_kernel(%arg0: i32, %arg1: memref<8x512xf32, #tpu.memory_space<vmem>>, %arg2: memref<512x1024xbf16, #tpu.memory_space<vmem>>, %arg3: memref<1x1024xf32, #tpu.memory_space<vmem>>, %arg4: memref<1x1024xf32, #tpu.memory_space<vmem>>, %arg5: memref<1x1xf32, #tpu.memory_space<smem>>, %arg6: memref<8x1xf32, #tpu.memory_space<vmem>>) attributes {dimension_semantics = [#tpu.dimension_semantics<parallel>], iteration_bounds = array<i64: 1>, scalar_prefetch = 0 : i64, scratch_operands = 0 : i64, tpu.core_type = #tpu.core_type<tc>, window_params = [{transform_indices = @transform_0, window_bounds = array<i64: 8, 512>}, {pipeline_mode = #tpu.pipeline_mode<synchronous>, transform_indices = @transform_1, window_bounds = array<i64: 512, 1024>}, {pipeline_mode = #tpu.pipeline_mode<synchronous>, transform_indices = @transform_2, window_bounds = array<i64: 1, 1024>}, {pipeline_mode = #tpu.pipeline_mode<synchronous>, transform_indices = @transform_3, window_bounds = array<i64: 1, 1024>}, {transform_indices = @transform_4, window_bounds = array<i64: 1, 1>}, {transform_indices = @transform_5, window_bounds = array<i64: 8, 1>}]} {
    %c0 = arith.constant 0 : index
    %c0_0 = arith.constant 0 : index
    %0 = vector.load %arg1[%c0, %c0_0] : memref<8x512xf32, #tpu.memory_space<vmem>>, vector<8x512xf32>
    %1 = arith.truncf %0 : vector<8x512xf32> to vector<8x512xbf16>
    %c0_1 = arith.constant 0 : index
    %c0_2 = arith.constant 0 : index
    %2 = vector.load %arg2[%c0_1, %c0_2] : memref<512x1024xbf16, #tpu.memory_space<vmem>>, vector<512x1024xbf16>
    %cst = arith.constant dense<0.000000e+00> : vector<8x1024xf32>
    %3 = tpu.matmul %1, %2, %cst {dimension_numbers = #tpu.dot_dimension_numbers<[1], [0], [0], [1], [0, 0, 1, 1], [], []>} : vector<8x512xbf16>, vector<512x1024xbf16>, vector<8x1024xf32> -> vector<8x1024xf32>
    %c0_3 = arith.constant 0 : index
    %c0_4 = arith.constant 0 : index
    %4 = vector.load %arg3[%c0_3, %c0_4] : memref<1x1024xf32, #tpu.memory_space<vmem>>, vector<1x1024xf32>
    %5 = vector.broadcast %4 : vector<1x1024xf32> to vector<8x1024xf32>
    %6 = arith.addf %3, %5 : vector<8x1024xf32>
    %cst_5 = arith.constant 0.000000e+00 : f32
    %7 = vector.broadcast %cst_5 : f32 to vector<8x1024xf32>
    %8 = arith.maximumf %6, %7 : vector<8x1024xf32>
    %c0_6 = arith.constant 0 : index
    %c0_7 = arith.constant 0 : index
    %9 = vector.load %arg4[%c0_6, %c0_7] : memref<1x1024xf32, #tpu.memory_space<vmem>>, vector<1x1024xf32>
    %10 = vector.broadcast %9 : vector<1x1024xf32> to vector<8x1024xf32>
    %11 = arith.mulf %8, %10 : vector<8x1024xf32>
    %cst_8 = arith.constant dense<0.000000e+00> : vector<8xf32>
    %12 = vector.multi_reduction <add>, %11, %cst_8 [1] : vector<8x1024xf32> to vector<8xf32>
    %13 = vector.shape_cast %12 : vector<8xf32> to vector<8x1xf32>
    %c0_9 = arith.constant 0 : index
    %c0_10 = arith.constant 0 : index
    %14 = memref.load %arg5[%c0_9, %c0_10] : memref<1x1xf32, #tpu.memory_space<smem>>
    %15 = vector.broadcast %14 : f32 to vector<8x1xf32>
    %16 = arith.addf %13, %15 : vector<8x1xf32>
    %cst_11 = arith.constant 0.000000e+00 : f32
    %17 = vector.broadcast %cst_11 : f32 to vector<8x1xf32>
    %18 = arith.subf %17, %16 : vector<8x1xf32>
    %19 = math.exp %18 : vector<8x1xf32>
    %cst_12 = arith.constant 1.000000e+00 : f32
    %20 = vector.broadcast %cst_12 : f32 to vector<8x1xf32>
    %21 = arith.addf %20, %19 : vector<8x1xf32>
    %cst_13 = arith.constant 1.000000e+00 : f32
    %22 = vector.broadcast %cst_13 : f32 to vector<8x1xf32>
    %23 = arith.divf %22, %21 : vector<8x1xf32>
    %c0_14 = arith.constant 0 : index
    %c0_15 = arith.constant 0 : index
    %24 = vector.load %arg6[%c0_14, %c0_15] : memref<8x1xf32, #tpu.memory_space<vmem>>, vector<8x1xf32>
    tpu.vector_store %arg6[%c0_14, %c0_15], %23 {strides = array<i32>} : memref<8x1xf32, #tpu.memory_space<vmem>>, vector<8x1xf32>,
    return
  }
  func.func @transform_0(%arg0: i32) -> (i32, i32) {
    %c0_i32 = arith.constant 0 : i32
    %c0_i32_0 = arith.constant 0 : i32
    return %arg0, %c0_i32 : i32, i32
  }
  func.func @transform_1(%arg0: i32) -> (i32, i32) {
    %c0_i32 = arith.constant 0 : i32
    %c0_i32_0 = arith.constant 0 : i32
    %c0_i32_1 = arith.constant 0 : i32
    return %c0_i32, %c0_i32_0 : i32, i32
  }
  func.func @transform_2(%arg0: i32) -> (i32, i32) {
    %c0_i32 = arith.constant 0 : i32
    %c0_i32_0 = arith.constant 0 : i32
    %c0_i32_1 = arith.constant 0 : i32
    return %c0_i32, %c0_i32_0 : i32, i32
  }
  func.func @transform_3(%arg0: i32) -> (i32, i32) {
    %c0_i32 = arith.constant 0 : i32
    %c0_i32_0 = arith.constant 0 : i32
    %c0_i32_1 = arith.constant 0 : i32
    return %c0_i32, %c0_i32_0 : i32, i32
  }
  func.func @transform_4(%arg0: i32) -> (i32, i32) {
    %c0_i32 = arith.constant 0 : i32
    %c0_i32_0 = arith.constant 0 : i32
    %c0_i32_1 = arith.constant 0 : i32
    return %c0_i32, %c0_i32_0 : i32, i32
  }
  func.func @transform_5(%arg0: i32) -> (i32, i32) {
    %c0_i32 = arith.constant 0 : i32
    %c0_i32_0 = arith.constant 0 : i32
    return %arg0, %c0_i32 : i32, i32
  }
}

</mosaic_0001>

<llo_original>
// kernel: tpu_custom_call.1
$region0: #{tpu_custom_call.1}
  #allocation0 [shape = 'u32[]', space=smem, size = 0x4, offset = 0x4, fixed_abs, tag = 'smem constant byte address 0x4 - core index']
  #allocation1 [shape = 'u32[144,128]{1,0:T(1,128)}', space=vmem, size = 0x12000, scoped, tag = 'internal scratch']
  #allocation2 [shape = 'f32[1,1]{1,0:T(1,128)S(6)}', space=smem, size = 0x200, scoped, tag = 'scoped memory for tpu_custom_call.1']
  %s0 = inlined_call_operand.hbm [shape: f32[8,512], index: 0, kind: input, shape index: {}]
  %s1 = inlined_call_operand.hbm [shape: bf16[512,1024], index: 1, kind: input, shape index: {}]
  %s2 = inlined_call_operand.vmem [shape: f32[1,1024], index: 2, kind: input, shape index: {}]
  %s3 = inlined_call_operand.hbm [shape: f32[1,1024], index: 3, kind: input, shape index: {}]
  %s4 = inlined_call_operand.<no memory space> [shape: f32[1,1], index: 4, kind: input, shape index: {}]
  %s5 = inlined_call_operand.vmem [shape: f32[8,1], index: 5, kind: output, shape index: {}]
  %s6 = sld [smem:[#allocation0]]
  $region42: #{tpu_custom_call.1} parent=0
    _
  %s8 = ssub.s32 1, %s6
  %s9 = scalar_select 0, %s8, %s6
  %10 = sst [smem:[#allocation2]] %s4
  $region1: #{tpu_custom_call.1} parent=0
    #allocation3 [shape = 'u8[16384]{0}', space=vmem, size = 0x4000, scoped, tag = 'input window, operand 0, single buffered']
    #allocation4 [shape = 's32[1]{0}', space=sflag, size = 0x4, scoped, tag = 'scoped memory for tpu_custom_call.1']
    #allocation5 [shape = 'u8[1048576]{0}', space=vmem, size = 0x100000, scoped, tag = 'input window, operand 1, single buffered']
    #allocation6 [shape = 's32[1]{0}', space=sflag, size = 0x4, scoped, tag = 'scoped memory for tpu_custom_call.1']
    #allocation7 [shape = 'u8[4096]{0}', space=vmem, size = 0x1000, scoped, tag = 'input window, operand 3, single buffered']
    %11 = vsyncpa [#allocation4], 0
    %12 = vsyncpa [#allocation6], 0
    // Predicated region
    $region2: #{tpu_custom_call.1} parent=1 // pred_check
      _
    $region3: #{tpu_custom_call.1} parent=1 // pred_check_branch
      %14 = sbr.rel (0) target = $region5
    $region4: #{tpu_custom_call.1} parent=1 // pred_region
      %s16 = ssub.s32 512, 512
      %17 = vsyncadd [#allocation4], %s16
      %s19 = sshll.u32 [#allocation3], 4
      %s20 = int_to_ptr.vmem [resolvable:$true] %s19
      %22 = dma.hbm_to_vmem [thread:$0]  %s0, 512, %s20, [#allocation4]
    $region5: #{tpu_custom_call.1} parent=1 // pred_fallthru
      _
    // Predicated region
    $region6: #{tpu_custom_call.1} parent=1 // pred_check
      _
    $region7: #{tpu_custom_call.1} parent=1 // pred_check_branch
      %24 = sbr.rel (0) target = $region9
    $region8: #{tpu_custom_call.1} parent=1 // pred_region
      %s26 = ssub.s32 32768, 32768
      %27 = vsyncadd [#allocation6], %s26
      %s28 = sshll.u32 [#allocation5], 4
      %s29 = int_to_ptr.vmem [resolvable:$true] %s28
      %34 = dma.hbm_to_vmem [thread:$0]  %s1, 32768, %s29, [#allocation6], 512, 512, 32
    $region9: #{tpu_custom_call.1} parent=1 // pred_fallthru
      _
    // Predicated region
    $region10: #{tpu_custom_call.1} parent=1 // pred_check
      _
    $region11: #{tpu_custom_call.1} parent=1 // pred_check_branch
      %36 = sbr.rel (0) target = $region13
    $region12: #{tpu_custom_call.1} parent=1 // pred_region
      _
    $region13: #{tpu_custom_call.1} parent=1 // pred_fallthru
      _
    // Predicated region
    $region14: #{tpu_custom_call.1} parent=1 // pred_check
      _
    $region15: #{tpu_custom_call.1} parent=1 // pred_check_branch
      %38 = sbr.rel (0) target = $region17
    $region16: #{tpu_custom_call.1} parent=1 // pred_region
      %s40 = ssub.s32 128, 128
      %41 = vsyncadd [#allocation6], %s40
      %s43 = sshll.u32 [#allocation7], 4
      %s44 = int_to_ptr.vmem [resolvable:$true] %s43
      %46 = dma.hbm_to_vmem [thread:$0]  %s3, 128, %s44, [#allocation6]
    $region17: #{tpu_custom_call.1} parent=1 // pred_fallthru
      _
    // Predicated region
    $region18: #{tpu_custom_call.1} parent=1 // pred_check
      _
    $region19: #{tpu_custom_call.1} parent=1 // pred_check_branch
      %48 = sbr.rel (0) target = $region21
    $region20: #{tpu_custom_call.1} parent=1 // pred_region
      _
    $region21: #{tpu_custom_call.1} parent=1 // pred_fallthru
      _
    // Predicated region
    $region22: #{tpu_custom_call.1} parent=1 // pred_check
      _
    $region23: #{tpu_custom_call.1} parent=1 // pred_check_branch
      %50 = sbr.rel (0) target = $region25
    $region24: #{tpu_custom_call.1} parent=1 // pred_region
      %51 = dma.done [#allocation4], 512
    $region25: #{tpu_custom_call.1} parent=1 // pred_fallthru
      _
    // Predicated region
    $region26: #{tpu_custom_call.1} parent=1 // pred_check
      _
    $region27: #{tpu_custom_call.1} parent=1 // pred_check_branch
      %53 = sbr.rel (0) target = $region29
    $region28: #{tpu_custom_call.1} parent=1 // pred_region
      %54 = dma.done [#allocation6], 32768
    $region29: #{tpu_custom_call.1} parent=1 // pred_fallthru
      _
    // Predicated region
    $region30: #{tpu_custom_call.1} parent=1 // pred_check
      _
    $region31: #{tpu_custom_call.1} parent=1 // pred_check_branch
      %56 = sbr.rel (0) target = $region33
    $region32: #{tpu_custom_call.1} parent=1 // pred_region
      %57 = dma.done [#allocation6], 128
    $region33: #{tpu_custom_call.1} parent=1 // pred_fallthru
      _
    %v58 = vld [vmem:[#allocation3] sm:$0xff]
    %v59 = vld [vmem:[#allocation3 + $0x8] sm:$0xff]
    %v60 = vld [vmem:[#allocation3 + $0x10] sm:$0xff]
    %v61 = vld [vmem:[#allocation3 + $0x18] sm:$0xff]
    %v62 = vpack.c.bf16 %v58, %v58
    %v63 = vpack.c.bf16 %v59, %v59
    %v64 = vpack.c.bf16 %v60, %v60
    %v65 = vpack.c.bf16 %v61, %v61
    %v66 = vld [vmem:[#allocation5] sm:$0xff]
    %v67 = vld [vmem:[#allocation5 + $0x8] sm:$0xff]
    %v68 = vld [vmem:[#allocation5 + $0x10] sm:$0xff]
    %v69 = vld [vmem:[#allocation5 + $0x18] sm:$0xff]
    %v70 = vld [vmem:[#allocation5 + $0x20] sm:$0xff]
    %v71 = vld [vmem:[#allocation5 + $0x28] sm:$0xff]
    %v72 = vld [vmem:[#allocation5 + $0x30] sm:$0xff]
    %v73 = vld [vmem:[#allocation5 + $0x38] sm:$0xff]
    %v74 = vld [vmem:[#allocation5 + $0x40] sm:$0xff]
    %v75 = vld [vmem:[#allocation5 + $0x48] sm:$0xff]
    %v76 = vld [vmem:[#allocation5 + $0x50] sm:$0xff]
    %v77 = vld [vmem:[#allocation5 + $0x58] sm:$0xff]
    %v78 = vld [vmem:[#allocation5 + $0x60] sm:$0xff]
    %v79 = vld [vmem:[#allocation5 + $0x68] sm:$0xff]
    %v80 = vld [vmem:[#allocation5 + $0x70] sm:$0xff]
    %v81 = vld [vmem:[#allocation5 + $0x78] sm:$0xff]
    %v82 = vld [vmem:[#allocation5 + $0x80] sm:$0xff]
    %v83 = vld [vmem:[#allocation5 + $0x88] sm:$0xff]
    %v84 = vld [vmem:[#allocation5 + $0x90] sm:$0xff]
    %v85 = vld [vmem:[#allocation5 + $0x98] sm:$0xff]
    %v86 = vld [vmem:[#allocation5 + $0xa0] sm:$0xff]
    %v87 = vld [vmem:[#allocation5 + $0xa8] sm:$0xff]
    %v88 = vld [vmem:[#allocation5 + $0xb0] sm:$0xff]
    %v89 = vld [vmem:[#allocation5 + $0xb8] sm:$0xff]
    %v90 = vld [vmem:[#allocation5 + $0xc0] sm:$0xff]
    %v91 = vld [vmem:[#allocation5 + $0xc8] sm:$0xff]
    %v92 = vld [vmem:[#allocation5 + $0xd0] sm:$0xff]
    %v93 = vld [vmem:[#allocation5 + $0xd8] sm:$0xff]
    %v94 = vld [vmem:[#allocation5 + $0xe0] sm:$0xff]
    %v95 = vld [vmem:[#allocation5 + $0xe8] sm:$0xff]
    %v96 = vld [vmem:[#allocation5 + $0xf0] sm:$0xff]
    %v97 = vld [vmem:[#allocation5 + $0xf8] sm:$0xff]
    %v98 = vld [vmem:[#allocation5 + $0x100] sm:$0xff]
    %v99 = vld [vmem:[#allocation5 + $0x108] sm:$0xff]
    %v100 = vld [vmem:[#allocation5 + $0x110] sm:$0xff]
    %v101 = vld [vmem:[#allocation5 + $0x118] sm:$0xff]
    %v102 = vld [vmem:[#allocation5 + $0x120] sm:$0xff]
    %v103 = vld [vmem:[#allocation5 + $0x128] sm:$0xff]
    %v104 = vld [vmem:[#allocation5 + $0x130] sm:$0xff]
    %v105 = vld [vmem:[#allocation5 + $0x138] sm:$0xff]
    %v106 = vld [vmem:[#allocation5 + $0x140] sm:$0xff]
    %v107 = vld [vmem:[#allocation5 + $0x148] sm:$0xff]
    %v108 = vld [vmem:[#allocation5 + $0x150] sm:$0xff]
    %v109 = vld [vmem:[#allocation5 + $0x158] sm:$0xff]
    %v110 = vld [vmem:[#allocation5 + $0x160] sm:$0xff]
    %v111 = vld [vmem:[#allocation5 + $0x168] sm:$0xff]
    %v112 = vld [vmem:[#allocation5 + $0x170] sm:$0xff]
    %v113 = vld [vmem:[#allocation5 + $0x178] sm:$0xff]
    %v114 = vld [vmem:[#allocation5 + $0x180] sm:$0xff]
    %v115 = vld [vmem:[#allocation5 + $0x188] sm:$0xff]
    %v116 = vld [vmem:[#allocation5 + $0x190] sm:$0xff]
    %v117 = vld [vmem:[#allocation5 + $0x198] sm:$0xff]
    %v118 = vld [vmem:[#allocation5 + $0x1a0] sm:$0xff]
    %v119 = vld [vmem:[#allocation5 + $0x1a8] sm:$0xff]
    %v120 = vld [vmem:[#allocation5 + $0x1b0] sm:$0xff]
    %v121 = vld [vmem:[#allocation5 + $0x1b8] sm:$0xff]
    %v122 = vld [vmem:[#allocation5 + $0x1c0] sm:$0xff]
    %v123 = vld [vmem:[#allocation5 + $0x1c8] sm:$0xff]
    %v124 = vld [vmem:[#allocation5 + $0x1d0] sm:$0xff]
    %v125 = vld [vmem:[#allocation5 + $0x1d8] sm:$0xff]
    %v126 = vld [vmem:[#allocation5 + $0x1e0] sm:$0xff]
    %v127 = vld [vmem:[#allocation5 + $0x1e8] sm:$0xff]
    %v128 = vld [vmem:[#allocation5 + $0x1f0] sm:$0xff]
    %v129 = vld [vmem:[#allocation5 + $0x1f8] sm:$0xff]
    %v130 = vld [vmem:[#allocation5 + $0x200] sm:$0xff]
    %v131 = vld [vmem:[#allocation5 + $0x208] sm:$0xff]
    %v132 = vld [vmem:[#allocation5 + $0x210] sm:$0xff]
    %v133 = vld [vmem:[#allocation5 + $0x218] sm:$0xff]
    %v134 = vld [vmem:[#allocation5 + $0x220] sm:$0xff]
    %v135 = vld [vmem:[#allocation5 + $0x228] sm:$0xff]
    %v136 = vld [vmem:[#allocation5 + $0x230] sm:$0xff]
    %v137 = vld [vmem:[#allocation5 + $0x238] sm:$0xff]
    %v138 = vld [vmem:[#allocation5 + $0x240] sm:$0xff]
    %v139 = vld [vmem:[#allocation5 + $0x248] sm:$0xff]
    %v140 = vld [vmem:[#allocation5 + $0x250] sm:$0xff]
    %v141 = vld [vmem:[#allocation5 + $0x258] sm:$0xff]
    %v142 = vld [vmem:[#allocation5 + $0x260] sm:$0xff]
    %v143 = vld [vmem:[#allocation5 + $0x268] sm:$0xff]
    %v144 = vld [vmem:[#allocation5 + $0x270] sm:$0xff]
    %v145 = vld [vmem:[#allocation5 + $0x278] sm:$0xff]
    %v146 = vld [vmem:[#allocation5 + $0x280] sm:$0xff]
    %v147 = vld [vmem:[#allocation5 + $0x288] sm:$0xff]
    %v148 = vld [vmem:[#allocation5 + $0x290] sm:$0xff]
    %v149 = vld [vmem:[#allocation5 + $0x298] sm:$0xff]
    %v150 = vld [vmem:[#allocation5 + $0x2a0] sm:$0xff]
    %v151 = vld [vmem:[#allocation5 + $0x2a8] sm:$0xff]
    %v152 = vld [vmem:[#allocation5 + $0x2b0] sm:$0xff]
    %v153 = vld [vmem:[#allocation5 + $0x2b8] sm:$0xff]
    %v154 = vld [vmem:[#allocation5 + $0x2c0] sm:$0xff]
    %v155 = vld [vmem:[#allocation5 + $0x2c8] sm:$0xff]
    %v156 = vld [vmem:[#allocation5 + $0x2d0] sm:$0xff]
    %v157 = vld [vmem:[#allocation5 + $0x2d8] sm:$0xff]
    %v158 = vld [vmem:[#allocation5 + $0x2e0] sm:$0xff]
    %v159 = vld [vmem:[#allocation5 + $0x2e8] sm:$0xff]
    %v160 = vld [vmem:[#allocation5 + $0x2f0] sm:$0xff]
    %v161 = vld [vmem:[#allocation5 + $0x2f8] sm:$0xff]
    %v162 = vld [vmem:[#allocation5 + $0x300] sm:$0xff]
    %v163 = vld [vmem:[#allocation5 + $0x308] sm:$0xff]
    %v164 = vld [vmem:[#allocation5 + $0x310] sm:$0xff]
    %v165 = vld [vmem:[#allocation5 + $0x318] sm:$0xff]
    %v166 = vld [vmem:[#allocation5 + $0x320] sm:$0xff]
    %v167 = vld [vmem:[#allocation5 + $0x328] sm:$0xff]
    %v168 = vld [vmem:[#allocation5 + $0x330] sm:$0xff]
    %v169 = vld [vmem:[#allocation5 + $0x338] sm:$0xff]
    %v170 = vld [vmem:[#allocation5 + $0x340] sm:$0xff]
    %v171 = vld [vmem:[#allocation5 + $0x348] sm:$0xff]
    %v172 = vld [vmem:[#allocation5 + $0x350] sm:$0xff]
    %v173 = vld [vmem:[#allocation5 + $0x358] sm:$0xff]
    %v174 = vld [vmem:[#allocation5 + $0x360] sm:$0xff]
    %v175 = vld [vmem:[#allocation5 + $0x368] sm:$0xff]
    %v176 = vld [vmem:[#allocation5 + $0x370] sm:$0xff]
    %v177 = vld [vmem:[#allocation5 + $0x378] sm:$0xff]
    %v178 = vld [vmem:[#allocation5 + $0x380] sm:$0xff]
    %v179 = vld [vmem:[#allocation5 + $0x388] sm:$0xff]
    %v180 = vld [vmem:[#allocation5 + $0x390] sm:$0xff]
    %v181 = vld [vmem:[#allocation5 + $0x398] sm:$0xff]
    %v182 = vld [vmem:[#allocation5 + $0x3a0] sm:$0xff]
    %v183 = vld [vmem:[#allocation5 + $0x3a8] sm:$0xff]
    %v184 = vld [vmem:[#allocation5 + $0x3b0] sm:$0xff]
    %v185 = vld [vmem:[#allocation5 + $0x3b8] sm:$0xff]
    %v186 = vld [vmem:[#allocation5 + $0x3c0] sm:$0xff]
    %v187 = vld [vmem:[#allocation5 + $0x3c8] sm:$0xff]
    %v188 = vld [vmem:[#allocation5 + $0x3d0] sm:$0xff]
    %v189 = vld [vmem:[#allocation5 + $0x3d8] sm:$0xff]
    %v190 = vld [vmem:[#allocation5 + $0x3e0] sm:$0xff]
    %v191 = vld [vmem:[#allocation5 + $0x3e8] sm:$0xff]
    %v192 = vld [vmem:[#allocation5 + $0x3f0] sm:$0xff]
    %v193 = vld [vmem:[#allocation5 + $0x3f8] sm:$0xff]
    %v194 = vld [vmem:[#allocation5 + $0x400] sm:$0xff]
    %v195 = vld [vmem:[#allocation5 + $0x408] sm:$0xff]
    %v196 = vld [vmem:[#allocation5 + $0x410] sm:$0xff]
    %v197 = vld [vmem:[#allocation5 + $0x418] sm:$0xff]
    %v198 = vld [vmem:[#allocation5 + $0x420] sm:$0xff]
    %v199 = vld [vmem:[#allocation5 + $0x428] sm:$0xff]
    %v200 = vld [vmem:[#allocation5 + $0x430] sm:$0xff]
    %v201 = vld [vmem:[#allocation5 + $0x438] sm:$0xff]
    %v202 = vld [vmem:[#allocation5 + $0x440] sm:$0xff]
    %v203 = vld [vmem:[#allocation5 + $0x448] sm:$0xff]
    %v204 = vld [vmem:[#allocation5 + $0x450] sm:$0xff]
    %v205 = vld [vmem:[#allocation5 + $0x458] sm:$0xff]
    %v206 = vld [vmem:[#allocation5 + $0x460] sm:$0xff]
    %v207 = vld [vmem:[#allocation5 + $0x468] sm:$0xff]
    %v208 = vld [vmem:[#allocation5 + $0x470] sm:$0xff]
    %v209 = vld [vmem:[#allocation5 + $0x478] sm:$0xff]
    %v210 = vld [vmem:[#allocation5 + $0x480] sm:$0xff]
    %v211 = vld [vmem:[#allocation5 + $0x488] sm:$0xff]
    %v212 = vld [vmem:[#allocation5 + $0x490] sm:$0xff]
    %v213 = vld [vmem:[#allocation5 + $0x498] sm:$0xff]
    %v214 = vld [vmem:[#allocation5 + $0x4a0] sm:$0xff]
    %v215 = vld [vmem:[#allocation5 + $0x4a8] sm:$0xff]
    %v216 = vld [vmem:[#allocation5 + $0x4b0] sm:$0xff]
    %v217 = vld [vmem:[#allocation5 + $0x4b8] sm:$0xff]
    %v218 = vld [vmem:[#allocation5 + $0x4c0] sm:$0xff]
    %v219 = vld [vmem:[#allocation5 + $0x4c8] sm:$0xff]
    %v220 = vld [vmem:[#allocation5 + $0x4d0] sm:$0xff]
    %v221 = vld [vmem:[#allocation5 + $0x4d8] sm:$0xff]
    %v222 = vld [vmem:[#allocation5 + $0x4e0] sm:$0xff]
    %v223 = vld [vmem:[#allocation5 + $0x4e8] sm:$0xff]
    %v224 = vld [vmem:[#allocation5 + $0x4f0] sm:$0xff]
    %v225 = vld [vmem:[#allocation5 + $0x4f8] sm:$0xff]
    %v226 = vld [vmem:[#allocation5 + $0x500] sm:$0xff]
    %v227 = vld [vmem:[#allocation5 + $0x508] sm:$0xff]
    %v228 = vld [vmem:[#allocation5 + $0x510] sm:$0xff]
    %v229 = vld [vmem:[#allocation5 + $0x518] sm:$0xff]
    %v230 = vld [vmem:[#allocation5 + $0x520] sm:$0xff]
    %v231 = vld [vmem:[#allocation5 + $0x528] sm:$0xff]
    %v232 = vld [vmem:[#allocation5 + $0x530] sm:$0xff]
    %v233 = vld [vmem:[#allocation5 + $0x538] sm:$0xff]
    %v234 = vld [vmem:[#allocation5 + $0x540] sm:$0xff]
    %v235 = vld [vmem:[#allocation5 + $0x548] sm:$0xff]
    %v236 = vld [vmem:[#allocation5 + $0x550] sm:$0xff]
    %v237 = vld [vmem:[#allocation5 + $0x558] sm:$0xff]
    %v238 = vld [vmem:[#allocation5 + $0x560] sm:$0xff]
    %v239 = vld [vmem:[#allocation5 + $0x568] sm:$0xff]
    %v240 = vld [vmem:[#allocation5 + $0x570] sm:$0xff]
    %v241 = vld [vmem:[#allocation5 + $0x578] sm:$0xff]
    %v242 = vld [vmem:[#allocation5 + $0x580] sm:$0xff]
    %v243 = vld [vmem:[#allocation5 + $0x588] sm:$0xff]
    %v244 = vld [vmem:[#allocation5 + $0x590] sm:$0xff]
    %v245 = vld [vmem:[#allocation5 + $0x598] sm:$0xff]
    %v246 = vld [vmem:[#allocation5 + $0x5a0] sm:$0xff]
    %v247 = vld [vmem:[#allocation5 + $0x5a8] sm:$0xff]
    %v248 = vld [vmem:[#allocation5 + $0x5b0] sm:$0xff]
    %v249 = vld [vmem:[#allocation5 + $0x5b8] sm:$0xff]
    %v250 = vld [vmem:[#allocation5 + $0x5c0] sm:$0xff]
    %v251 = vld [vmem:[#allocation5 + $0x5c8] sm:$0xff]
    %v252 = vld [vmem:[#allocation5 + $0x5d0] sm:$0xff]
    %v253 = vld [vmem:[#allocation5 + $0x5d8] sm:$0xff]
    %v254 = vld [vmem:[#allocation5 + $0x5e0] sm:$0xff]
    %v255 = vld [vmem:[#allocation5 + $0x5e8] sm:$0xff]
    %v256 = vld [vmem:[#allocation5 + $0x5f0] sm:$0xff]
    %v257 = vld [vmem:[#allocation5 + $0x5f8] sm:$0xff]
    %v258 = vld [vmem:[#allocation5 + $0x600] sm:$0xff]
    %v259 = vld [vmem:[#allocation5 + $0x608] sm:$0xff]
    %v260 = vld [vmem:[#allocation5 + $0x610] sm:$0xff]
    %v261 = vld [vmem:[#allocation5 + $0x618] sm:$0xff]
    %v262 = vld [vmem:[#allocation5 + $0x620] sm:$0xff]
    %v263 = vld [vmem:[#allocation5 + $0x628] sm:$0xff]
    %v264 = vld [vmem:[#allocation5 + $0x630] sm:$0xff]
    %v265 = vld [vmem:[#allocation5 + $0x638] sm:$0xff]
    %v266 = vld [vmem:[#allocation5 + $0x640] sm:$0xff]
    %v267 = vld [vmem:[#allocation5 + $0x648] sm:$0xff]
    %v268 = vld [vmem:[#allocation5 + $0x650] sm:$0xff]
    %v269 = vld [vmem:[#allocation5 + $0x658] sm:$0xff]
    %v270 = vld [vmem:[#allocation5 + $0x660] sm:$0xff]
    %v271 = vld [vmem:[#allocation5 + $0x668] sm:$0xff]
    %v272 = vld [vmem:[#allocation5 + $0x670] sm:$0xff]
    %v273 = vld [vmem:[#allocation5 + $0x678] sm:$0xff]
    %v274 = vld [vmem:[#allocation5 + $0x680] sm:$0xff]
    %v275 = vld [vmem:[#allocation5 + $0x688] sm:$0xff]
    %v276 = vld [vmem:[#allocation5 + $0x690] sm:$0xff]
    %v277 = vld [vmem:[#allocation5 + $0x698] sm:$0xff]
    %v278 = vld [vmem:[#allocation5 + $0x6a0] sm:$0xff]
    %v279 = vld [vmem:[#allocation5 + $0x6a8] sm:$0xff]
    %v280 = vld [vmem:[#allocation5 + $0x6b0] sm:$0xff]
    %v281 = vld [vmem:[#allocation5 + $0x6b8] sm:$0xff]
    %v282 = vld [vmem:[#allocation5 + $0x6c0] sm:$0xff]
    %v283 = vld [vmem:[#allocation5 + $0x6c8] sm:$0xff]
    %v284 = vld [vmem:[#allocation5 + $0x6d0] sm:$0xff]
    %v285 = vld [vmem:[#allocation5 + $0x6d8] sm:$0xff]
    %v286 = vld [vmem:[#allocation5 + $0x6e0] sm:$0xff]
    %v287 = vld [vmem:[#allocation5 + $0x6e8] sm:$0xff]
    %v288 = vld [vmem:[#allocation5 + $0x6f0] sm:$0xff]
    %v289 = vld [vmem:[#allocation5 + $0x6f8] sm:$0xff]
    %v290 = vld [vmem:[#allocation5 + $0x700] sm:$0xff]
    %v291 = vld [vmem:[#allocation5 + $0x708] sm:$0xff]
    %v292 = vld [vmem:[#allocation5 + $0x710] sm:$0xff]
    %v293 = vld [vmem:[#allocation5 + $0x718] sm:$0xff]
    %v294 = vld [vmem:[#allocation5 + $0x720] sm:$0xff]
    %v295 = vld [vmem:[#allocation5 + $0x728] sm:$0xff]
    %v296 = vld [vmem:[#allocation5 + $0x730] sm:$0xff]
    %v297 = vld [vmem:[#allocation5 + $0x738] sm:$0xff]
    %v298 = vld [vmem:[#allocation5 + $0x740] sm:$0xff]
    %v299 = vld [vmem:[#allocation5 + $0x748] sm:$0xff]
    %v300 = vld [vmem:[#allocation5 + $0x750] sm:$0xff]
    %v301 = vld [vmem:[#allocation5 + $0x758] sm:$0xff]
    %v302 = vld [vmem:[#allocation5 + $0x760] sm:$0xff]
    %v303 = vld [vmem:[#allocation5 + $0x768] sm:$0xff]
    %v304 = vld [vmem:[#allocation5 + $0x770] sm:$0xff]
    %v305 = vld [vmem:[#allocation5 + $0x778] sm:$0xff]
    %v306 = vld [vmem:[#allocation5 + $0x780] sm:$0xff]
    %v307 = vld [vmem:[#allocation5 + $0x788] sm:$0xff]
    %v308 = vld [vmem:[#allocation5 + $0x790] sm:$0xff]
    %v309 = vld [vmem:[#allocation5 + $0x798] sm:$0xff]
    %v310 = vld [vmem:[#allocation5 + $0x7a0] sm:$0xff]
    %v311 = vld [vmem:[#allocation5 + $0x7a8] sm:$0xff]
    %v312 = vld [vmem:[#allocation5 + $0x7b0] sm:$0xff]
    %v313 = vld [vmem:[#allocation5 + $0x7b8] sm:$0xff]
    %v314 = vld [vmem:[#allocation5 + $0x7c0] sm:$0xff]
    %v315 = vld [vmem:[#allocation5 + $0x7c8] sm:$0xff]
    %v316 = vld [vmem:[#allocation5 + $0x7d0] sm:$0xff]
    %v317 = vld [vmem:[#allocation5 + $0x7d8] sm:$0xff]
    %v318 = vld [vmem:[#allocation5 + $0x7e0] sm:$0xff]
    %v319 = vld [vmem:[#allocation5 + $0x7e8] sm:$0xff]
    %v320 = vld [vmem:[#allocation5 + $0x7f0] sm:$0xff]
    %v321 = vld [vmem:[#allocation5 + $0x7f8] sm:$0xff]
    %v322 = vld [vmem:[%s2] sm:$0xff]
    %v324 = vlaneseq
    %v325 = vshrl.u32 %v324, 7
    %v326 = vsub.s32 0, %v325
    %v327 = vrot.slane %v322, %v326
    %v328 = vlaneseq
    %v329 = vshrl.u32 %v328, 7
    %v330 = vsub.s32 1, %v329
    %v331 = vrot.slane %v322, %v330
    %v332 = vlaneseq
    %v333 = vshrl.u32 %v332, 7
    %v334 = vsub.s32 2, %v333
    %v335 = vrot.slane %v322, %v334
    %v336 = vlaneseq
    %v337 = vshrl.u32 %v336, 7
    %v338 = vsub.s32 3, %v337
    %v339 = vrot.slane %v322, %v338
    %v340 = vlaneseq
    %v341 = vshrl.u32 %v340, 7
    %v342 = vsub.s32 4, %v341
    %v343 = vrot.slane %v322, %v342
    %v344 = vlaneseq
    %v345 = vshrl.u32 %v344, 7
    %v346 = vsub.s32 5, %v345
    %v347 = vrot.slane %v322, %v346
    %v348 = vlaneseq
    %v349 = vshrl.u32 %v348, 7
    %v350 = vsub.s32 6, %v349
    %v351 = vrot.slane %v322, %v350
    %v352 = vlaneseq
    %v353 = vshrl.u32 %v352, 7
    %v354 = vsub.s32 7, %v353
    %v355 = vrot.slane %v322, %v354
    %v620 = vunpack.c.l.b16 %v66
    %v621 = vunpack.c.h.b16 %v66
    %v622 = vunpack.c.l.b16 %v67
    %v623 = vunpack.c.h.b16 %v67
    %v624 = vunpack.c.l.b16 %v68
    %v625 = vunpack.c.h.b16 %v68
    %v626 = vunpack.c.l.b16 %v69
    %v627 = vunpack.c.h.b16 %v69
    %v628 = vunpack.c.l.b16 %v70
    %v629 = vunpack.c.h.b16 %v70
    %v630 = vunpack.c.l.b16 %v71
    %v631 = vunpack.c.h.b16 %v71
    %v632 = vunpack.c.l.b16 %v72
    %v633 = vunpack.c.h.b16 %v72
    %v634 = vunpack.c.l.b16 %v73
    %v635 = vunpack.c.h.b16 %v73
    %v636 = vunpack.c.l.b16 %v74
    %v637 = vunpack.c.h.b16 %v74
    %v638 = vunpack.c.l.b16 %v75
    %v639 = vunpack.c.h.b16 %v75
    %v640 = vunpack.c.l.b16 %v76
    %v641 = vunpack.c.h.b16 %v76
    %v642 = vunpack.c.l.b16 %v77
    %v643 = vunpack.c.h.b16 %v77
    %v644 = vunpack.c.l.b16 %v78
    %v645 = vunpack.c.h.b16 %v78
    %v646 = vunpack.c.l.b16 %v79
    %v647 = vunpack.c.h.b16 %v79
    %v648 = vunpack.c.l.b16 %v80
    %v649 = vunpack.c.h.b16 %v80
    %v650 = vunpack.c.l.b16 %v81
    %v651 = vunpack.c.h.b16 %v81
    %v652 = vunpack.c.l.b16 %v82
    %v653 = vunpack.c.h.b16 %v82
    %v654 = vunpack.c.l.b16 %v83
    %v655 = vunpack.c.h.b16 %v83
    %v656 = vunpack.c.l.b16 %v84
    %v657 = vunpack.c.h.b16 %v84
    %v658 = vunpack.c.l.b16 %v85
    %v659 = vunpack.c.h.b16 %v85
    %v660 = vunpack.c.l.b16 %v86
    %v661 = vunpack.c.h.b16 %v86
    %v662 = vunpack.c.l.b16 %v87
    %v663 = vunpack.c.h.b16 %v87
    %v664 = vunpack.c.l.b16 %v88
    %v665 = vunpack.c.h.b16 %v88
    %v666 = vunpack.c.l.b16 %v89
    %v667 = vunpack.c.h.b16 %v89
    %v668 = vunpack.c.l.b16 %v90
    %v669 = vunpack.c.h.b16 %v90
    %v670 = vunpack.c.l.b16 %v91
    %v671 = vunpack.c.h.b16 %v91
    %v672 = vunpack.c.l.b16 %v92
    %v673 = vunpack.c.h.b16 %v92
    %v674 = vunpack.c.l.b16 %v93
    %v675 = vunpack.c.h.b16 %v93
    %v676 = vunpack.c.l.b16 %v94
    %v677 = vunpack.c.h.b16 %v94
    %v678 = vunpack.c.l.b16 %v95
    %v679 = vunpack.c.h.b16 %v95
    %v680 = vunpack.c.l.b16 %v96
    %v681 = vunpack.c.h.b16 %v96
    %v682 = vunpack.c.l.b16 %v97
    %v683 = vunpack.c.h.b16 %v97
    %v684 = vunpack.c.l.b16 %v98
    %v685 = vunpack.c.h.b16 %v98
    %v686 = vunpack.c.l.b16 %v99
    %v687 = vunpack.c.h.b16 %v99
    %v688 = vunpack.c.l.b16 %v100
    %v689 = vunpack.c.h.b16 %v100
    %v690 = vunpack.c.l.b16 %v101
    %v691 = vunpack.c.h.b16 %v101
    %v692 = vunpack.c.l.b16 %v102
    %v693 = vunpack.c.h.b16 %v102
    %v694 = vunpack.c.l.b16 %v103
    %v695 = vunpack.c.h.b16 %v103
    %v696 = vunpack.c.l.b16 %v104
    %v697 = vunpack.c.h.b16 %v104
    %v698 = vunpack.c.l.b16 %v105
    %v699 = vunpack.c.h.b16 %v105
    %v700 = vunpack.c.l.b16 %v106
    %v701 = vunpack.c.h.b16 %v106
    %v702 = vunpack.c.l.b16 %v107
    %v703 = vunpack.c.h.b16 %v107
    %v704 = vunpack.c.l.b16 %v108
    %v705 = vunpack.c.h.b16 %v108
    %v706 = vunpack.c.l.b16 %v109
    %v707 = vunpack.c.h.b16 %v109
    %v708 = vunpack.c.l.b16 %v110
    %v709 = vunpack.c.h.b16 %v110
    %v710 = vunpack.c.l.b16 %v111
    %v711 = vunpack.c.h.b16 %v111
    %v712 = vunpack.c.l.b16 %v112
    %v713 = vunpack.c.h.b16 %v112
    %v714 = vunpack.c.l.b16 %v113
    %v715 = vunpack.c.h.b16 %v113
    %v716 = vunpack.c.l.b16 %v114
    %v717 = vunpack.c.h.b16 %v114
    %v718 = vunpack.c.l.b16 %v115
    %v719 = vunpack.c.h.b16 %v115
    %v720 = vunpack.c.l.b16 %v116
    %v721 = vunpack.c.h.b16 %v116
    %v722 = vunpack.c.l.b16 %v117
    %v723 = vunpack.c.h.b16 %v117
    %v724 = vunpack.c.l.b16 %v118
    %v725 = vunpack.c.h.b16 %v118
    %v726 = vunpack.c.l.b16 %v119
    %v727 = vunpack.c.h.b16 %v119
    %v728 = vunpack.c.l.b16 %v120
    %v729 = vunpack.c.h.b16 %v120
    %v730 = vunpack.c.l.b16 %v121
    %v731 = vunpack.c.h.b16 %v121
    %v732 = vunpack.c.l.b16 %v122
    %v733 = vunpack.c.h.b16 %v122
    %v734 = vunpack.c.l.b16 %v123
    %v735 = vunpack.c.h.b16 %v123
    %v736 = vunpack.c.l.b16 %v124
    %v737 = vunpack.c.h.b16 %v124
    %v738 = vunpack.c.l.b16 %v125
    %v739 = vunpack.c.h.b16 %v125
    %v740 = vunpack.c.l.b16 %v126
    %v741 = vunpack.c.h.b16 %v126
    %v742 = vunpack.c.l.b16 %v127
    %v743 = vunpack.c.h.b16 %v127
    %v744 = vunpack.c.l.b16 %v128
    %v745 = vunpack.c.h.b16 %v128
    %v746 = vunpack.c.l.b16 %v129
    %v747 = vunpack.c.h.b16 %v129
    %v748 = vunpack.c.l.b16 %v130
    %v749 = vunpack.c.h.b16 %v130
    %v750 = vunpack.c.l.b16 %v131
    %v751 = vunpack.c.h.b16 %v131
    %v752 = vunpack.c.l.b16 %v132
    %v753 = vunpack.c.h.b16 %v132
    %v754 = vunpack.c.l.b16 %v133
    %v755 = vunpack.c.h.b16 %v133
    %v756 = vunpack.c.l.b16 %v134
    %v757 = vunpack.c.h.b16 %v134
    %v758 = vunpack.c.l.b16 %v135
    %v759 = vunpack.c.h.b16 %v135
    %v760 = vunpack.c.l.b16 %v136
    %v761 = vunpack.c.h.b16 %v136
    %v762 = vunpack.c.l.b16 %v137
    %v763 = vunpack.c.h.b16 %v137
    %v764 = vunpack.c.l.b16 %v138
    %v765 = vunpack.c.h.b16 %v138
    %v766 = vunpack.c.l.b16 %v139
    %v767 = vunpack.c.h.b16 %v139
    %v768 = vunpack.c.l.b16 %v140
    %v769 = vunpack.c.h.b16 %v140
    %v770 = vunpack.c.l.b16 %v141
    %v771 = vunpack.c.h.b16 %v141
    %v772 = vunpack.c.l.b16 %v142
    %v773 = vunpack.c.h.b16 %v142
    %v774 = vunpack.c.l.b16 %v143
    %v775 = vunpack.c.h.b16 %v143
    %v776 = vunpack.c.l.b16 %v144
    %v777 = vunpack.c.h.b16 %v144
    %v778 = vunpack.c.l.b16 %v145
    %v779 = vunpack.c.h.b16 %v145
    %v780 = vunpack.c.l.b16 %v146
    %v781 = vunpack.c.h.b16 %v146
    %v782 = vunpack.c.l.b16 %v147
    %v783 = vunpack.c.h.b16 %v147
    %v784 = vunpack.c.l.b16 %v148
    %v785 = vunpack.c.h.b16 %v148
    %v786 = vunpack.c.l.b16 %v149
    %v787 = vunpack.c.h.b16 %v149
    %v788 = vunpack.c.l.b16 %v150
    %v789 = vunpack.c.h.b16 %v150
    %v790 = vunpack.c.l.b16 %v151
    %v791 = vunpack.c.h.b16 %v151
    %v792 = vunpack.c.l.b16 %v152
    %v793 = vunpack.c.h.b16 %v152
    %v794 = vunpack.c.l.b16 %v153
    %v795 = vunpack.c.h.b16 %v153
    %v796 = vunpack.c.l.b16 %v154
    %v797 = vunpack.c.h.b16 %v154
    %v798 = vunpack.c.l.b16 %v155
    %v799 = vunpack.c.h.b16 %v155
    %v800 = vunpack.c.l.b16 %v156
    %v801 = vunpack.c.h.b16 %v156
    %v802 = vunpack.c.l.b16 %v157
    %v803 = vunpack.c.h.b16 %v157
    %v804 = vunpack.c.l.b16 %v158
    %v805 = vunpack.c.h.b16 %v158
    %v806 = vunpack.c.l.b16 %v159
    %v807 = vunpack.c.h.b16 %v159
    %v808 = vunpack.c.l.b16 %v160
    %v809 = vunpack.c.h.b16 %v160
    %v810 = vunpack.c.l.b16 %v161
    %v811 = vunpack.c.h.b16 %v161
    %v812 = vunpack.c.l.b16 %v162
    %v813 = vunpack.c.h.b16 %v162
    %v814 = vunpack.c.l.b16 %v163
    %v815 = vunpack.c.h.b16 %v163
    %v816 = vunpack.c.l.b16 %v164
    %v817 = vunpack.c.h.b16 %v164
    %v818 = vunpack.c.l.b16 %v165
    %v819 = vunpack.c.h.b16 %v165
    %v820 = vunpack.c.l.b16 %v166
    %v821 = vunpack.c.h.b16 %v166
    %v822 = vunpack.c.l.b16 %v167
    %v823 = vunpack.c.h.b16 %v167
    %v824 = vunpack.c.l.b16 %v168
    %v825 = vunpack.c.h.b16 %v168
    %v826 = vunpack.c.l.b16 %v169
    %v827 = vunpack.c.h.b16 %v169
    %v828 = vunpack.c.l.b16 %v170
    %v829 = vunpack.c.h.b16 %v170
    %v830 = vunpack.c.l.b16 %v171
    %v831 = vunpack.c.h.b16 %v171
    %v832 = vunpack.c.l.b16 %v172
    %v833 = vunpack.c.h.b16 %v172
    %v834 = vunpack.c.l.b16 %v173
    %v835 = vunpack.c.h.b16 %v173
    %v836 = vunpack.c.l.b16 %v174
    %v837 = vunpack.c.h.b16 %v174
    %v838 = vunpack.c.l.b16 %v175
    %v839 = vunpack.c.h.b16 %v175
    %v840 = vunpack.c.l.b16 %v176
    %v841 = vunpack.c.h.b16 %v176
    %v842 = vunpack.c.l.b16 %v177
    %v843 = vunpack.c.h.b16 %v177
    %v844 = vunpack.c.l.b16 %v178
    %v845 = vunpack.c.h.b16 %v178
    %v846 = vunpack.c.l.b16 %v179
    %v847 = vunpack.c.h.b16 %v179
    %v848 = vunpack.c.l.b16 %v180
    %v849 = vunpack.c.h.b16 %v180
    %v850 = vunpack.c.l.b16 %v181
    %v851 = vunpack.c.h.b16 %v181
    %v852 = vunpack.c.l.b16 %v182
    %v853 = vunpack.c.h.b16 %v182
    %v854 = vunpack.c.l.b16 %v183
    %v855 = vunpack.c.h.b16 %v183
    %v856 = vunpack.c.l.b16 %v184
    %v857 = vunpack.c.h.b16 %v184
    %v858 = vunpack.c.l.b16 %v185
    %v859 = vunpack.c.h.b16 %v185
    %v860 = vunpack.c.l.b16 %v186
    %v861 = vunpack.c.h.b16 %v186
    %v862 = vunpack.c.l.b16 %v187
    %v863 = vunpack.c.h.b16 %v187
    %v864 = vunpack.c.l.b16 %v188
    %v865 = vunpack.c.h.b16 %v188
    %v866 = vunpack.c.l.b16 %v189
    %v867 = vunpack.c.h.b16 %v189
    %v868 = vunpack.c.l.b16 %v190
    %v869 = vunpack.c.h.b16 %v190
    %v870 = vunpack.c.l.b16 %v191
    %v871 = vunpack.c.h.b16 %v191
    %v872 = vunpack.c.l.b16 %v192
    %v873 = vunpack.c.h.b16 %v192
    %v874 = vunpack.c.l.b16 %v193
    %v875 = vunpack.c.h.b16 %v193
    %v876 = vunpack.c.l.b16 %v194
    %v877 = vunpack.c.h.b16 %v194
    %v878 = vunpack.c.l.b16 %v195
    %v879 = vunpack.c.h.b16 %v195
    %v880 = vunpack.c.l.b16 %v196
    %v881 = vunpack.c.h.b16 %v196
    %v882 = vunpack.c.l.b16 %v197
    %v883 = vunpack.c.h.b16 %v197
    %v884 = vunpack.c.l.b16 %v198
    %v885 = vunpack.c.h.b16 %v198
    %v886 = vunpack.c.l.b16 %v199
    %v887 = vunpack.c.h.b16 %v199
    %v888 = vunpack.c.l.b16 %v200
    %v889 = vunpack.c.h.b16 %v200
    %v890 = vunpack.c.l.b16 %v201
    %v891 = vunpack.c.h.b16 %v201
    %v892 = vunpack.c.l.b16 %v202
    %v893 = vunpack.c.h.b16 %v202
    %v894 = vunpack.c.l.b16 %v203
    %v895 = vunpack.c.h.b16 %v203
    %v896 = vunpack.c.l.b16 %v204
    %v897 = vunpack.c.h.b16 %v204
    %v898 = vunpack.c.l.b16 %v205
    %v899 = vunpack.c.h.b16 %v205
    %v900 = vunpack.c.l.b16 %v206
    %v901 = vunpack.c.h.b16 %v206
    %v902 = vunpack.c.l.b16 %v207
    %v903 = vunpack.c.h.b16 %v207
    %v904 = vunpack.c.l.b16 %v208
    %v905 = vunpack.c.h.b16 %v208
    %v906 = vunpack.c.l.b16 %v209
    %v907 = vunpack.c.h.b16 %v209
    %v908 = vunpack.c.l.b16 %v210
    %v909 = vunpack.c.h.b16 %v210
    %v910 = vunpack.c.l.b16 %v211
    %v911 = vunpack.c.h.b16 %v211
    %v912 = vunpack.c.l.b16 %v212
    %v913 = vunpack.c.h.b16 %v212
    %v914 = vunpack.c.l.b16 %v213
    %v915 = vunpack.c.h.b16 %v213
    %v916 = vunpack.c.l.b16 %v214
    %v917 = vunpack.c.h.b16 %v214
    %v918 = vunpack.c.l.b16 %v215
    %v919 = vunpack.c.h.b16 %v215
    %v920 = vunpack.c.l.b16 %v216
    %v921 = vunpack.c.h.b16 %v216
    %v922 = vunpack.c.l.b16 %v217
    %v923 = vunpack.c.h.b16 %v217
    %v924 = vunpack.c.l.b16 %v218
    %v925 = vunpack.c.h.b16 %v218
    %v926 = vunpack.c.l.b16 %v219
    %v927 = vunpack.c.h.b16 %v219
    %v928 = vunpack.c.l.b16 %v220
    %v929 = vunpack.c.h.b16 %v220
    %v930 = vunpack.c.l.b16 %v221
    %v931 = vunpack.c.h.b16 %v221
    %v932 = vunpack.c.l.b16 %v222
    %v933 = vunpack.c.h.b16 %v222
    %v934 = vunpack.c.l.b16 %v223
    %v935 = vunpack.c.h.b16 %v223
    %v936 = vunpack.c.l.b16 %v224
    %v937 = vunpack.c.h.b16 %v224
    %v938 = vunpack.c.l.b16 %v225
    %v939 = vunpack.c.h.b16 %v225
    %v940 = vunpack.c.l.b16 %v226
    %v941 = vunpack.c.h.b16 %v226
    %v942 = vunpack.c.l.b16 %v227
    %v943 = vunpack.c.h.b16 %v227
    %v944 = vunpack.c.l.b16 %v228
    %v945 = vunpack.c.h.b16 %v228
    %v946 = vunpack.c.l.b16 %v229
    %v947 = vunpack.c.h.b16 %v229
    %v948 = vunpack.c.l.b16 %v230
    %v949 = vunpack.c.h.b16 %v230
    %v950 = vunpack.c.l.b16 %v231
    %v951 = vunpack.c.h.b16 %v231
    %v952 = vunpack.c.l.b16 %v232
    %v953 = vunpack.c.h.b16 %v232
    %v954 = vunpack.c.l.b16 %v233
    %v955 = vunpack.c.h.b16 %v233
    %v956 = vunpack.c.l.b16 %v234
    %v957 = vunpack.c.h.b16 %v234
    %v958 = vunpack.c.l.b16 %v235
    %v959 = vunpack.c.h.b16 %v235
    %v960 = vunpack.c.l.b16 %v236
    %v961 = vunpack.c.h.b16 %v236
    %v962 = vunpack.c.l.b16 %v237
    %v963 = vunpack.c.h.b16 %v237
    %v964 = vunpack.c.l.b16 %v238
    %v965 = vunpack.c.h.b16 %v238
    %v966 = vunpack.c.l.b16 %v239
    %v967 = vunpack.c.h.b16 %v239
    %v968 = vunpack.c.l.b16 %v240
    %v969 = vunpack.c.h.b16 %v240
    %v970 = vunpack.c.l.b16 %v241
    %v971 = vunpack.c.h.b16 %v241
    %v972 = vunpack.c.l.b16 %v242
    %v973 = vunpack.c.h.b16 %v242
    %v974 = vunpack.c.l.b16 %v243
    %v975 = vunpack.c.h.b16 %v243
    %v976 = vunpack.c.l.b16 %v244
    %v977 = vunpack.c.h.b16 %v244
    %v978 = vunpack.c.l.b16 %v245
    %v979 = vunpack.c.h.b16 %v245
    %v980 = vunpack.c.l.b16 %v246
    %v981 = vunpack.c.h.b16 %v246
    %v982 = vunpack.c.l.b16 %v247
    %v983 = vunpack.c.h.b16 %v247
    %v984 = vunpack.c.l.b16 %v248
    %v985 = vunpack.c.h.b16 %v248
    %v986 = vunpack.c.l.b16 %v249
    %v987 = vunpack.c.h.b16 %v249
    %v988 = vunpack.c.l.b16 %v250
    %v989 = vunpack.c.h.b16 %v250
    %v990 = vunpack.c.l.b16 %v251
    %v991 = vunpack.c.h.b16 %v251
    %v992 = vunpack.c.l.b16 %v252
    %v993 = vunpack.c.h.b16 %v252
    %v994 = vunpack.c.l.b16 %v253
    %v995 = vunpack.c.h.b16 %v253
    %v996 = vunpack.c.l.b16 %v254
    %v997 = vunpack.c.h.b16 %v254
    %v998 = vunpack.c.l.b16 %v255
    %v999 = vunpack.c.h.b16 %v255
    %v1000 = vunpack.c.l.b16 %v256
    %v1001 = vunpack.c.h.b16 %v256
    %v1002 = vunpack.c.l.b16 %v257
    %v1003 = vunpack.c.h.b16 %v257
    %v1004 = vunpack.c.l.b16 %v258
    %v1005 = vunpack.c.h.b16 %v258
    %v1006 = vunpack.c.l.b16 %v259
    %v1007 = vunpack.c.h.b16 %v259
    %v1008 = vunpack.c.l.b16 %v260
    %v1009 = vunpack.c.h.b16 %v260
    %v1010 = vunpack.c.l.b16 %v261
    %v1011 = vunpack.c.h.b16 %v261
    %v1012 = vunpack.c.l.b16 %v262
    %v1013 = vunpack.c.h.b16 %v262
    %v1014 = vunpack.c.l.b16 %v263
    %v1015 = vunpack.c.h.b16 %v263
    %v1016 = vunpack.c.l.b16 %v264
    %v1017 = vunpack.c.h.b16 %v264
    %v1018 = vunpack.c.l.b16 %v265
    %v1019 = vunpack.c.h.b16 %v265
    %v1020 = vunpack.c.l.b16 %v266
    %v1021 = vunpack.c.h.b16 %v266
    %v1022 = vunpack.c.l.b16 %v267
    %v1023 = vunpack.c.h.b16 %v267
    %v1024 = vunpack.c.l.b16 %v268
    %v1025 = vunpack.c.h.b16 %v268
    %v1026 = vunpack.c.l.b16 %v269
    %v1027 = vunpack.c.h.b16 %v269
    %v1028 = vunpack.c.l.b16 %v270
    %v1029 = vunpack.c.h.b16 %v270
    %v1030 = vunpack.c.l.b16 %v271
    %v1031 = vunpack.c.h.b16 %v271
    %v1032 = vunpack.c.l.b16 %v272
    %v1033 = vunpack.c.h.b16 %v272
    %v1034 = vunpack.c.l.b16 %v273
    %v1035 = vunpack.c.h.b16 %v273
    %v1036 = vunpack.c.l.b16 %v274
    %v1037 = vunpack.c.h.b16 %v274
    %v1038 = vunpack.c.l.b16 %v275
    %v1039 = vunpack.c.h.b16 %v275
    %v1040 = vunpack.c.l.b16 %v276
    %v1041 = vunpack.c.h.b16 %v276
    %v1042 = vunpack.c.l.b16 %v277
    %v1043 = vunpack.c.h.b16 %v277
    %v1044 = vunpack.c.l.b16 %v278
    %v1045 = vunpack.c.h.b16 %v278
    %v1046 = vunpack.c.l.b16 %v279
    %v1047 = vunpack.c.h.b16 %v279
    %v1048 = vunpack.c.l.b16 %v280
    %v1049 = vunpack.c.h.b16 %v280
    %v1050 = vunpack.c.l.b16 %v281
    %v1051 = vunpack.c.h.b16 %v281
    %v1052 = vunpack.c.l.b16 %v282
    %v1053 = vunpack.c.h.b16 %v282
    %v1054 = vunpack.c.l.b16 %v283
    %v1055 = vunpack.c.h.b16 %v283
    %v1056 = vunpack.c.l.b16 %v284
    %v1057 = vunpack.c.h.b16 %v284
    %v1058 = vunpack.c.l.b16 %v285
    %v1059 = vunpack.c.h.b16 %v285
    %v1060 = vunpack.c.l.b16 %v286
    %v1061 = vunpack.c.h.b16 %v286
    %v1062 = vunpack.c.l.b16 %v287
    %v1063 = vunpack.c.h.b16 %v287
    %v1064 = vunpack.c.l.b16 %v288
    %v1065 = vunpack.c.h.b16 %v288
    %v1066 = vunpack.c.l.b16 %v289
    %v1067 = vunpack.c.h.b16 %v289
    %v1068 = vunpack.c.l.b16 %v290
    %v1069 = vunpack.c.h.b16 %v290
    %v1070 = vunpack.c.l.b16 %v291
    %v1071 = vunpack.c.h.b16 %v291
    %v1072 = vunpack.c.l.b16 %v292
    %v1073 = vunpack.c.h.b16 %v292
    %v1074 = vunpack.c.l.b16 %v293
    %v1075 = vunpack.c.h.b16 %v293
    %v1076 = vunpack.c.l.b16 %v294
    %v1077 = vunpack.c.h.b16 %v294
    %v1078 = vunpack.c.l.b16 %v295
    %v1079 = vunpack.c.h.b16 %v295
    %v1080 = vunpack.c.l.b16 %v296
    %v1081 = vunpack.c.h.b16 %v296
    %v1082 = vunpack.c.l.b16 %v297
    %v1083 = vunpack.c.h.b16 %v297
    %v1084 = vunpack.c.l.b16 %v298
    %v1085 = vunpack.c.h.b16 %v298
    %v1086 = vunpack.c.l.b16 %v299
    %v1087 = vunpack.c.h.b16 %v299
    %v1088 = vunpack.c.l.b16 %v300
    %v1089 = vunpack.c.h.b16 %v300
    %v1090 = vunpack.c.l.b16 %v301
    %v1091 = vunpack.c.h.b16 %v301
    %v1092 = vunpack.c.l.b16 %v302
    %v1093 = vunpack.c.h.b16 %v302
    %v1094 = vunpack.c.l.b16 %v303
    %v1095 = vunpack.c.h.b16 %v303
    %v1096 = vunpack.c.l.b16 %v304
    %v1097 = vunpack.c.h.b16 %v304
    %v1098 = vunpack.c.l.b16 %v305
    %v1099 = vunpack.c.h.b16 %v305
    %v1100 = vunpack.c.l.b16 %v306
    %v1101 = vunpack.c.h.b16 %v306
    %v1102 = vunpack.c.l.b16 %v307
    %v1103 = vunpack.c.h.b16 %v307
    %v1104 = vunpack.c.l.b16 %v308
    %v1105 = vunpack.c.h.b16 %v308
    %v1106 = vunpack.c.l.b16 %v309
    %v1107 = vunpack.c.h.b16 %v309
    %v1108 = vunpack.c.l.b16 %v310
    %v1109 = vunpack.c.h.b16 %v310
    %v1110 = vunpack.c.l.b16 %v311
    %v1111 = vunpack.c.h.b16 %v311
    %v1112 = vunpack.c.l.b16 %v312
    %v1113 = vunpack.c.h.b16 %v312
    %v1114 = vunpack.c.l.b16 %v313
    %v1115 = vunpack.c.h.b16 %v313
    %v1116 = vunpack.c.l.b16 %v314
    %v1117 = vunpack.c.h.b16 %v314
    %v1118 = vunpack.c.l.b16 %v315
    %v1119 = vunpack.c.h.b16 %v315
    %v1120 = vunpack.c.l.b16 %v316
    %v1121 = vunpack.c.h.b16 %v316
    %v1122 = vunpack.c.l.b16 %v317
    %v1123 = vunpack.c.h.b16 %v317
    %v1124 = vunpack.c.l.b16 %v318
    %v1125 = vunpack.c.h.b16 %v318
    %v1126 = vunpack.c.l.b16 %v319
    %v1127 = vunpack.c.h.b16 %v319
    %v1128 = vunpack.c.l.b16 %v320
    %v1129 = vunpack.c.h.b16 %v320
    %v1130 = vunpack.c.l.b16 %v321
    %v1131 = vunpack.c.h.b16 %v321
    %v1132 = vpack.c.b16 %v628, %v620
    %v1133 = vpack.c.b16 %v629, %v621
    %v1134 = vpack.c.b16 %v630, %v622
    %v1135 = vpack.c.b16 %v631, %v623
    %v1136 = vpack.c.b16 %v632, %v624
    %v1137 = vpack.c.b16 %v633, %v625
    %v1138 = vpack.c.b16 %v634, %v626
    %v1139 = vpack.c.b16 %v635, %v627
    %v1140 = vpack.c.b16 %v644, %v636
    %v1141 = vpack.c.b16 %v645, %v637
    %v1142 = vpack.c.b16 %v646, %v638
    %v1143 = vpack.c.b16 %v647, %v639
    %v1144 = vpack.c.b16 %v648, %v640
    %v1145 = vpack.c.b16 %v649, %v641
    %v1146 = vpack.c.b16 %v650, %v642
    %v1147 = vpack.c.b16 %v651, %v643
    %v1148 = vpack.c.b16 %v660, %v652
    %v1149 = vpack.c.b16 %v661, %v653
    %v1150 = vpack.c.b16 %v662, %v654
    %v1151 = vpack.c.b16 %v663, %v655
    %v1152 = vpack.c.b16 %v664, %v656
    %v1153 = vpack.c.b16 %v665, %v657
    %v1154 = vpack.c.b16 %v666, %v658
    %v1155 = vpack.c.b16 %v667, %v659
    %v1156 = vpack.c.b16 %v676, %v668
    %v1157 = vpack.c.b16 %v677, %v669
    %v1158 = vpack.c.b16 %v678, %v670
    %v1159 = vpack.c.b16 %v679, %v671
    %v1160 = vpack.c.b16 %v680, %v672
    %v1161 = vpack.c.b16 %v681, %v673
    %v1162 = vpack.c.b16 %v682, %v674
    %v1163 = vpack.c.b16 %v683, %v675
    %v1164 = vpack.c.b16 %v692, %v684
    %v1165 = vpack.c.b16 %v693, %v685
    %v1166 = vpack.c.b16 %v694, %v686
    %v1167 = vpack.c.b16 %v695, %v687
    %v1168 = vpack.c.b16 %v696, %v688
    %v1169 = vpack.c.b16 %v697, %v689
    %v1170 = vpack.c.b16 %v698, %v690
    %v1171 = vpack.c.b16 %v699, %v691
    %v1172 = vpack.c.b16 %v708, %v700
    %v1173 = vpack.c.b16 %v709, %v701
    %v1174 = vpack.c.b16 %v710, %v702
    %v1175 = vpack.c.b16 %v711, %v703
    %v1176 = vpack.c.b16 %v712, %v704
    %v1177 = vpack.c.b16 %v713, %v705
    %v1178 = vpack.c.b16 %v714, %v706
    %v1179 = vpack.c.b16 %v715, %v707
    %v1180 = vpack.c.b16 %v724, %v716
    %v1181 = vpack.c.b16 %v725, %v717
    %v1182 = vpack.c.b16 %v726, %v718
    %v1183 = vpack.c.b16 %v727, %v719
    %v1184 = vpack.c.b16 %v728, %v720
    %v1185 = vpack.c.b16 %v729, %v721
    %v1186 = vpack.c.b16 %v730, %v722
    %v1187 = vpack.c.b16 %v731, %v723
    %v1188 = vpack.c.b16 %v740, %v732
    %v1189 = vpack.c.b16 %v741, %v733
    %v1190 = vpack.c.b16 %v742, %v734
    %v1191 = vpack.c.b16 %v743, %v735
    %v1192 = vpack.c.b16 %v744, %v736
    %v1193 = vpack.c.b16 %v745, %v737
    %v1194 = vpack.c.b16 %v746, %v738
    %v1195 = vpack.c.b16 %v747, %v739
    %v1196 = vpack.c.b16 %v756, %v748
    %v1197 = vpack.c.b16 %v757, %v749
    %v1198 = vpack.c.b16 %v758, %v750
    %v1199 = vpack.c.b16 %v759, %v751
    %v1200 = vpack.c.b16 %v760, %v752
    %v1201 = vpack.c.b16 %v761, %v753
    %v1202 = vpack.c.b16 %v762, %v754
    %v1203 = vpack.c.b16 %v763, %v755
    %v1204 = vpack.c.b16 %v772, %v764
    %v1205 = vpack.c.b16 %v773, %v765
    %v1206 = vpack.c.b16 %v774, %v766
    %v1207 = vpack.c.b16 %v775, %v767
    %v1208 = vpack.c.b16 %v776, %v768
    %v1209 = vpack.c.b16 %v777, %v769
    %v1210 = vpack.c.b16 %v778, %v770
    %v1211 = vpack.c.b16 %v779, %v771
    %v1212 = vpack.c.b16 %v788, %v780
    %v1213 = vpack.c.b16 %v789, %v781
    %v1214 = vpack.c.b16 %v790, %v782
    %v1215 = vpack.c.b16 %v791, %v783
    %v1216 = vpack.c.b16 %v792, %v784
    %v1217 = vpack.c.b16 %v793, %v785
    %v1218 = vpack.c.b16 %v794, %v786
    %v1219 = vpack.c.b16 %v795, %v787
    %v1220 = vpack.c.b16 %v804, %v796
    %v1221 = vpack.c.b16 %v805, %v797
    %v1222 = vpack.c.b16 %v806, %v798
    %v1223 = vpack.c.b16 %v807, %v799
    %v1224 = vpack.c.b16 %v808, %v800
    %v1225 = vpack.c.b16 %v809, %v801
    %v1226 = vpack.c.b16 %v810, %v802
    %v1227 = vpack.c.b16 %v811, %v803
    %v1228 = vpack.c.b16 %v820, %v812
    %v1229 = vpack.c.b16 %v821, %v813
    %v1230 = vpack.c.b16 %v822, %v814
    %v1231 = vpack.c.b16 %v823, %v815
    %v1232 = vpack.c.b16 %v824, %v816
    %v1233 = vpack.c.b16 %v825, %v817
    %v1234 = vpack.c.b16 %v826, %v818
    %v1235 = vpack.c.b16 %v827, %v819
    %v1236 = vpack.c.b16 %v836, %v828
    %v1237 = vpack.c.b16 %v837, %v829
    %v1238 = vpack.c.b16 %v838, %v830
    %v1239 = vpack.c.b16 %v839, %v831
    %v1240 = vpack.c.b16 %v840, %v832
    %v1241 = vpack.c.b16 %v841, %v833
    %v1242 = vpack.c.b16 %v842, %v834
    %v1243 = vpack.c.b16 %v843, %v835
    %v1244 = vpack.c.b16 %v852, %v844
    %v1245 = vpack.c.b16 %v853, %v845
    %v1246 = vpack.c.b16 %v854, %v846
    %v1247 = vpack.c.b16 %v855, %v847
    %v1248 = vpack.c.b16 %v856, %v848
    %v1249 = vpack.c.b16 %v857, %v849
    %v1250 = vpack.c.b16 %v858, %v850
    %v1251 = vpack.c.b16 %v859, %v851
    %v1252 = vpack.c.b16 %v868, %v860
    %v1253 = vpack.c.b16 %v869, %v861
    %v1254 = vpack.c.b16 %v870, %v862
    %v1255 = vpack.c.b16 %v871, %v863
    %v1256 = vpack.c.b16 %v872, %v864
    %v1257 = vpack.c.b16 %v873, %v865
    %v1258 = vpack.c.b16 %v874, %v866
    %v1259 = vpack.c.b16 %v875, %v867
    %v1260 = vpack.c.b16 %v884, %v876
    %v1261 = vpack.c.b16 %v885, %v877
    %v1262 = vpack.c.b16 %v886, %v878
    %v1263 = vpack.c.b16 %v887, %v879
    %v1264 = vpack.c.b16 %v888, %v880
    %v1265 = vpack.c.b16 %v889, %v881
    %v1266 = vpack.c.b16 %v890, %v882
    %v1267 = vpack.c.b16 %v891, %v883
    %v1268 = vpack.c.b16 %v900, %v892
    %v1269 = vpack.c.b16 %v901, %v893
    %v1270 = vpack.c.b16 %v902, %v894
    %v1271 = vpack.c.b16 %v903, %v895
    %v1272 = vpack.c.b16 %v904, %v896
    %v1273 = vpack.c.b16 %v905, %v897
    %v1274 = vpack.c.b16 %v906, %v898
    %v1275 = vpack.c.b16 %v907, %v899
    %v1276 = vpack.c.b16 %v916, %v908
    %v1277 = vpack.c.b16 %v917, %v909
    %v1278 = vpack.c.b16 %v918, %v910
    %v1279 = vpack.c.b16 %v919, %v911
    %v1280 = vpack.c.b16 %v920, %v912
    %v1281 = vpack.c.b16 %v921, %v913
    %v1282 = vpack.c.b16 %v922, %v914
    %v1283 = vpack.c.b16 %v923, %v915
    %v1284 = vpack.c.b16 %v932, %v924
    %v1285 = vpack.c.b16 %v933, %v925
    %v1286 = vpack.c.b16 %v934, %v926
    %v1287 = vpack.c.b16 %v935, %v927
    %v1288 = vpack.c.b16 %v936, %v928
    %v1289 = vpack.c.b16 %v937, %v929
    %v1290 = vpack.c.b16 %v938, %v930
    %v1291 = vpack.c.b16 %v939, %v931
    %v1292 = vpack.c.b16 %v948, %v940
    %v1293 = vpack.c.b16 %v949, %v941
    %v1294 = vpack.c.b16 %v950, %v942
    %v1295 = vpack.c.b16 %v951, %v943
    %v1296 = vpack.c.b16 %v952, %v944
    %v1297 = vpack.c.b16 %v953, %v945
    %v1298 = vpack.c.b16 %v954, %v946
    %v1299 = vpack.c.b16 %v955, %v947
    %v1300 = vpack.c.b16 %v964, %v956
    %v1301 = vpack.c.b16 %v965, %v957
    %v1302 = vpack.c.b16 %v966, %v958
    %v1303 = vpack.c.b16 %v967, %v959
    %v1304 = vpack.c.b16 %v968, %v960
    %v1305 = vpack.c.b16 %v969, %v961
    %v1306 = vpack.c.b16 %v970, %v962
    %v1307 = vpack.c.b16 %v971, %v963
    %v1308 = vpack.c.b16 %v980, %v972
    %v1309 = vpack.c.b16 %v981, %v973
    %v1310 = vpack.c.b16 %v982, %v974
    %v1311 = vpack.c.b16 %v983, %v975
    %v1312 = vpack.c.b16 %v984, %v976
    %v1313 = vpack.c.b16 %v985, %v977
    %v1314 = vpack.c.b16 %v986, %v978
    %v1315 = vpack.c.b16 %v987, %v979
    %v1316 = vpack.c.b16 %v996, %v988
    %v1317 = vpack.c.b16 %v997, %v989
    %v1318 = vpack.c.b16 %v998, %v990
    %v1319 = vpack.c.b16 %v999, %v991
    %v1320 = vpack.c.b16 %v1000, %v992
    %v1321 = vpack.c.b16 %v1001, %v993
    %v1322 = vpack.c.b16 %v1002, %v994
    %v1323 = vpack.c.b16 %v1003, %v995
    %v1324 = vpack.c.b16 %v1012, %v1004
    %v1325 = vpack.c.b16 %v1013, %v1005
    %v1326 = vpack.c.b16 %v1014, %v1006
    %v1327 = vpack.c.b16 %v1015, %v1007
    %v1328 = vpack.c.b16 %v1016, %v1008
    %v1329 = vpack.c.b16 %v1017, %v1009
    %v1330 = vpack.c.b16 %v1018, %v1010
    %v1331 = vpack.c.b16 %v1019, %v1011
    %v1332 = vpack.c.b16 %v1028, %v1020
    %v1333 = vpack.c.b16 %v1029, %v1021
    %v1334 = vpack.c.b16 %v1030, %v1022
    %v1335 = vpack.c.b16 %v1031, %v1023
    %v1336 = vpack.c.b16 %v1032, %v1024
    %v1337 = vpack.c.b16 %v1033, %v1025
    %v1338 = vpack.c.b16 %v1034, %v1026
    %v1339 = vpack.c.b16 %v1035, %v1027
    %v1340 = vpack.c.b16 %v1044, %v1036
    %v1341 = vpack.c.b16 %v1045, %v1037
    %v1342 = vpack.c.b16 %v1046, %v1038
    %v1343 = vpack.c.b16 %v1047, %v1039
    %v1344 = vpack.c.b16 %v1048, %v1040
    %v1345 = vpack.c.b16 %v1049, %v1041
    %v1346 = vpack.c.b16 %v1050, %v1042
    %v1347 = vpack.c.b16 %v1051, %v1043
    %v1348 = vpack.c.b16 %v1060, %v1052
    %v1349 = vpack.c.b16 %v1061, %v1053
    %v1350 = vpack.c.b16 %v1062, %v1054
    %v1351 = vpack.c.b16 %v1063, %v1055
    %v1352 = vpack.c.b16 %v1064, %v1056
    %v1353 = vpack.c.b16 %v1065, %v1057
    %v1354 = vpack.c.b16 %v1066, %v1058
    %v1355 = vpack.c.b16 %v1067, %v1059
    %v1356 = vpack.c.b16 %v1076, %v1068
    %v1357 = vpack.c.b16 %v1077, %v1069
    %v1358 = vpack.c.b16 %v1078, %v1070
    %v1359 = vpack.c.b16 %v1079, %v1071
    %v1360 = vpack.c.b16 %v1080, %v1072
    %v1361 = vpack.c.b16 %v1081, %v1073
    %v1362 = vpack.c.b16 %v1082, %v1074
    %v1363 = vpack.c.b16 %v1083, %v1075
    %v1364 = vpack.c.b16 %v1092, %v1084
    %v1365 = vpack.c.b16 %v1093, %v1085
    %v1366 = vpack.c.b16 %v1094, %v1086
    %v1367 = vpack.c.b16 %v1095, %v1087
    %v1368 = vpack.c.b16 %v1096, %v1088
    %v1369 = vpack.c.b16 %v1097, %v1089
    %v1370 = vpack.c.b16 %v1098, %v1090
    %v1371 = vpack.c.b16 %v1099, %v1091
    %v1372 = vpack.c.b16 %v1108, %v1100
    %v1373 = vpack.c.b16 %v1109, %v1101
    %v1374 = vpack.c.b16 %v1110, %v1102
    %v1375 = vpack.c.b16 %v1111, %v1103
    %v1376 = vpack.c.b16 %v1112, %v1104
    %v1377 = vpack.c.b16 %v1113, %v1105
    %v1378 = vpack.c.b16 %v1114, %v1106
    %v1379 = vpack.c.b16 %v1115, %v1107
    %v1380 = vpack.c.b16 %v1124, %v1116
    %v1381 = vpack.c.b16 %v1125, %v1117
    %v1382 = vpack.c.b16 %v1126, %v1118
    %v1383 = vpack.c.b16 %v1127, %v1119
    %v1384 = vpack.c.b16 %v1128, %v1120
    %v1385 = vpack.c.b16 %v1129, %v1121
    %v1386 = vpack.c.b16 %v1130, %v1122
    %v1387 = vpack.c.b16 %v1131, %v1123
    %1644 = vmatprep.subr.bf16.mxu0 %v1133
    %1645 = vmatpush1.bf16.msra.mxu0 %v1132
    %1646 = vmatprep.subr.bf16.mxu0 %v1141
    %1647 = vmatpush1.bf16.msra.mxu0 %v1140
    %1648 = vmatprep.subr.bf16.mxu0 %v1149
    %1649 = vmatpush1.bf16.msra.mxu0 %v1148
    %1650 = vmatprep.subr.bf16.mxu0 %v1157
    %1651 = vmatpush1.bf16.msra.mxu0 %v1156
    %1652 = vmatprep.subr.bf16.mxu0 %v1165
    %1653 = vmatpush1.bf16.msra.mxu0 %v1164
    %1654 = vmatprep.subr.bf16.mxu0 %v1173
    %1655 = vmatpush1.bf16.msra.mxu0 %v1172
    %1656 = vmatprep.subr.bf16.mxu0 %v1181
    %1657 = vmatpush1.bf16.msra.mxu0 %v1180
    %1658 = vmatprep.subr.bf16.mxu0 %v1189
    %1659 = vmatpush1.bf16.msra.mxu0 %v1188
    %1660 = vmatprep.subr.bf16.mxu0 %v1197
    %1661 = vmatpush1.bf16.msra.mxu0 %v1196
    %1662 = vmatprep.subr.bf16.mxu0 %v1205
    %1663 = vmatpush1.bf16.msra.mxu0 %v1204
    %1664 = vmatprep.subr.bf16.mxu0 %v1213
    %1665 = vmatpush1.bf16.msra.mxu0 %v1212
    %1666 = vmatprep.subr.bf16.mxu0 %v1221
    %1667 = vmatpush1.bf16.msra.mxu0 %v1220
    %1668 = vmatprep.subr.bf16.mxu0 %v1229
    %1669 = vmatpush1.bf16.msra.mxu0 %v1228
    %1670 = vmatprep.subr.bf16.mxu0 %v1237
    %1671 = vmatpush1.bf16.msra.mxu0 %v1236
    %1672 = vmatprep.subr.bf16.mxu0 %v1245
    %1673 = vmatpush1.bf16.msra.mxu0 %v1244
    %1674 = vmatprep.subr.bf16.mxu0 %v1253
    %1675 = vmatpush1.bf16.msra.mxu0 %v1252
    %1676 = vmatprep.mubr.bf16.mxu0 %v63
    %1677 = vmatmul.mubr.bf16.gmra.mrb[0].mxu0 %v62
    %v1678 = vpop.f32.mrb[0].mxu0
    %v1679 = vadd.f32 %v327, %v1678
    %v1680 = vpop.f32.mrb[0].mxu0
    %v1681 = vadd.f32 %v331, %v1680
    %v1682 = vpop.f32.mrb[0].mxu0
    %v1683 = vpop.f32.mrb[0].mxu0
    %1684 = vdwg.mxu0
    %1685 = vmatprep.subr.bf16.mxu0 %v1261
    %1686 = vmatpush1.bf16.msra.mxu0 %v1260
    %1687 = vmatprep.subr.bf16.mxu0 %v1269
    %1688 = vmatpush1.bf16.msra.mxu0 %v1268
    %1689 = vmatprep.subr.bf16.mxu0 %v1277
    %1690 = vmatpush1.bf16.msra.mxu0 %v1276
    %1691 = vmatprep.subr.bf16.mxu0 %v1285
    %1692 = vmatpush1.bf16.msra.mxu0 %v1284
    %1693 = vmatprep.subr.bf16.mxu0 %v1293
    %1694 = vmatpush1.bf16.msra.mxu0 %v1292
    %1695 = vmatprep.subr.bf16.mxu0 %v1301
    %1696 = vmatpush1.bf16.msra.mxu0 %v1300
    %1697 = vmatprep.subr.bf16.mxu0 %v1309
    %1698 = vmatpush1.bf16.msra.mxu0 %v1308
    %1699 = vmatprep.subr.bf16.mxu0 %v1317
    %1700 = vmatpush1.bf16.msra.mxu0 %v1316
    %1701 = vmatprep.subr.bf16.mxu0 %v1325
    %1702 = vmatpush1.bf16.msra.mxu0 %v1324
    %1703 = vmatprep.subr.bf16.mxu0 %v1333
    %1704 = vmatpush1.bf16.msra.mxu0 %v1332
    %1705 = vmatprep.subr.bf16.mxu0 %v1341
    %1706 = vmatpush1.bf16.msra.mxu0 %v1340
    %1707 = vmatprep.subr.bf16.mxu0 %v1349
    %1708 = vmatpush1.bf16.msra.mxu0 %v1348
    %1709 = vmatprep.subr.bf16.mxu0 %v1357
    %1710 = vmatpush1.bf16.msra.mxu0 %v1356
    %1711 = vmatprep.subr.bf16.mxu0 %v1365
    %1712 = vmatpush1.bf16.msra.mxu0 %v1364
    %1713 = vmatprep.subr.bf16.mxu0 %v1373
    %1714 = vmatpush1.bf16.msra.mxu0 %v1372
    %1715 = vmatprep.subr.bf16.mxu0 %v1381
    %1716 = vmatpush1.bf16.msra.mxu0 %v1380
    %1717 = vmatprep.mubr.bf16.mxu0 %v65
    %1718 = vmatmul.mubr.bf16.gmra.mrb[0].mxu0 %v64
    %v1719 = vpop.f32.mrb[0].mxu0
    %v1720 = vadd.f32 %v1679, %v1719
    %v1721 = vpop.f32.mrb[0].mxu0
    %v1722 = vadd.f32 %v1681, %v1721
    %v1723 = vpop.f32.mrb[0].mxu0
    %v1724 = vpop.f32.mrb[0].mxu0
    %1725 = vdwg.mxu0
    %1726 = vmatprep.subr.bf16.mxu0 %v1135
    %1727 = vmatpush1.bf16.msra.mxu0 %v1134
    %1728 = vmatprep.subr.bf16.mxu0 %v1143
    %1729 = vmatpush1.bf16.msra.mxu0 %v1142
    %1730 = vmatprep.subr.bf16.mxu0 %v1151
    %1731 = vmatpush1.bf16.msra.mxu0 %v1150
    %1732 = vmatprep.subr.bf16.mxu0 %v1159
    %1733 = vmatpush1.bf16.msra.mxu0 %v1158
    %1734 = vmatprep.subr.bf16.mxu0 %v1167
    %1735 = vmatpush1.bf16.msra.mxu0 %v1166
    %1736 = vmatprep.subr.bf16.mxu0 %v1175
    %1737 = vmatpush1.bf16.msra.mxu0 %v1174
    %1738 = vmatprep.subr.bf16.mxu0 %v1183
    %1739 = vmatpush1.bf16.msra.mxu0 %v1182
    %1740 = vmatprep.subr.bf16.mxu0 %v1191
    %1741 = vmatpush1.bf16.msra.mxu0 %v1190
    %1742 = vmatprep.subr.bf16.mxu0 %v1199
    %1743 = vmatpush1.bf16.msra.mxu0 %v1198
    %1744 = vmatprep.subr.bf16.mxu0 %v1207
    %1745 = vmatpush1.bf16.msra.mxu0 %v1206
    %1746 = vmatprep.subr.bf16.mxu0 %v1215
    %1747 = vmatpush1.bf16.msra.mxu0 %v1214
    %1748 = vmatprep.subr.bf16.mxu0 %v1223
    %1749 = vmatpush1.bf16.msra.mxu0 %v1222
    %1750 = vmatprep.subr.bf16.mxu0 %v1231
    %1751 = vmatpush1.bf16.msra.mxu0 %v1230
    %1752 = vmatprep.subr.bf16.mxu0 %v1239
    %1753 = vmatpush1.bf16.msra.mxu0 %v1238
    %1754 = vmatprep.subr.bf16.mxu0 %v1247
    %1755 = vmatpush1.bf16.msra.mxu0 %v1246
    %1756 = vmatprep.subr.bf16.mxu0 %v1255
    %1757 = vmatpush1.bf16.msra.mxu0 %v1254
    %1758 = vmatprep.mubr.bf16.mxu0 %v63
    %1759 = vmatmul.mubr.bf16.gmra.mrb[0].mxu0 %v62
    %v1760 = vpop.f32.mrb[0].mxu0
    %v1761 = vadd.f32 %v335, %v1760
    %v1762 = vpop.f32.mrb[0].mxu0
    %v1763 = vadd.f32 %v339, %v1762
    %v1764 = vpop.f32.mrb[0].mxu0
    %v1765 = vpop.f32.mrb[0].mxu0
    %1766 = vdwg.mxu0
    %1767 = vmatprep.subr.bf16.mxu0 %v1263
    %1768 = vmatpush1.bf16.msra.mxu0 %v1262
    %1769 = vmatprep.subr.bf16.mxu0 %v1271
    %1770 = vmatpush1.bf16.msra.mxu0 %v1270
    %1771 = vmatprep.subr.bf16.mxu0 %v1279
    %1772 = vmatpush1.bf16.msra.mxu0 %v1278
    %1773 = vmatprep.subr.bf16.mxu0 %v1287
    %1774 = vmatpush1.bf16.msra.mxu0 %v1286
    %1775 = vmatprep.subr.bf16.mxu0 %v1295
    %1776 = vmatpush1.bf16.msra.mxu0 %v1294
    %1777 = vmatprep.subr.bf16.mxu0 %v1303
    %1778 = vmatpush1.bf16.msra.mxu0 %v1302
    %1779 = vmatprep.subr.bf16.mxu0 %v1311
    %1780 = vmatpush1.bf16.msra.mxu0 %v1310
    %1781 = vmatprep.subr.bf16.mxu0 %v1319
    %1782 = vmatpush1.bf16.msra.mxu0 %v1318
    %1783 = vmatprep.subr.bf16.mxu0 %v1327
    %1784 = vmatpush1.bf16.msra.mxu0 %v1326
    %1785 = vmatprep.subr.bf16.mxu0 %v1335
    %1786 = vmatpush1.bf16.msra.mxu0 %v1334
    %1787 = vmatprep.subr.bf16.mxu0 %v1343
    %1788 = vmatpush1.bf16.msra.mxu0 %v1342
    %1789 = vmatprep.subr.bf16.mxu0 %v1351
    %1790 = vmatpush1.bf16.msra.mxu0 %v1350
    %1791 = vmatprep.subr.bf16.mxu0 %v1359
    %1792 = vmatpush1.bf16.msra.mxu0 %v1358
    %1793 = vmatprep.subr.bf16.mxu0 %v1367
    %1794 = vmatpush1.bf16.msra.mxu0 %v1366
    %1795 = vmatprep.subr.bf16.mxu0 %v1375
    %1796 = vmatpush1.bf16.msra.mxu0 %v1374
    %1797 = vmatprep.subr.bf16.mxu0 %v1383
    %1798 = vmatpush1.bf16.msra.mxu0 %v1382
    %1799 = vmatprep.mubr.bf16.mxu0 %v65
    %1800 = vmatmul.mubr.bf16.gmra.mrb[0].mxu0 %v64
    %v1801 = vpop.f32.mrb[0].mxu0
    %v1802 = vadd.f32 %v1761, %v1801
    %v1803 = vpop.f32.mrb[0].mxu0
    %v1804 = vadd.f32 %v1763, %v1803
    %v1805 = vpop.f32.mrb[0].mxu0
    %v1806 = vpop.f32.mrb[0].mxu0
    %1807 = vdwg.mxu0
    %1808 = vmatprep.subr.bf16.mxu0 %v1137
    %1809 = vmatpush1.bf16.msra.mxu0 %v1136
    %1810 = vmatprep.subr.bf16.mxu0 %v1145
    %1811 = vmatpush1.bf16.msra.mxu0 %v1144
    %1812 = vmatprep.subr.bf16.mxu0 %v1153
    %1813 = vmatpush1.bf16.msra.mxu0 %v1152
    %1814 = vmatprep.subr.bf16.mxu0 %v1161
    %1815 = vmatpush1.bf16.msra.mxu0 %v1160
    %1816 = vmatprep.subr.bf16.mxu0 %v1169
    %1817 = vmatpush1.bf16.msra.mxu0 %v1168
    %1818 = vmatprep.subr.bf16.mxu0 %v1177
    %1819 = vmatpush1.bf16.msra.mxu0 %v1176
    %1820 = vmatprep.subr.bf16.mxu0 %v1185
    %1821 = vmatpush1.bf16.msra.mxu0 %v1184
    %1822 = vmatprep.subr.bf16.mxu0 %v1193
    %1823 = vmatpush1.bf16.msra.mxu0 %v1192
    %1824 = vmatprep.subr.bf16.mxu0 %v1201
    %1825 = vmatpush1.bf16.msra.mxu0 %v1200
    %1826 = vmatprep.subr.bf16.mxu0 %v1209
    %1827 = vmatpush1.bf16.msra.mxu0 %v1208
    %1828 = vmatprep.subr.bf16.mxu0 %v1217
    %1829 = vmatpush1.bf16.msra.mxu0 %v1216
    %1830 = vmatprep.subr.bf16.mxu0 %v1225
    %1831 = vmatpush1.bf16.msra.mxu0 %v1224
    %1832 = vmatprep.subr.bf16.mxu0 %v1233
    %1833 = vmatpush1.bf16.msra.mxu0 %v1232
    %1834 = vmatprep.subr.bf16.mxu0 %v1241
    %1835 = vmatpush1.bf16.msra.mxu0 %v1240
    %1836 = vmatprep.subr.bf16.mxu0 %v1249
    %1837 = vmatpush1.bf16.msra.mxu0 %v1248
    %1838 = vmatprep.subr.bf16.mxu0 %v1257
    %1839 = vmatpush1.bf16.msra.mxu0 %v1256
    %1840 = vmatprep.mubr.bf16.mxu0 %v63
    %1841 = vmatmul.mubr.bf16.gmra.mrb[0].mxu0 %v62
    %v1842 = vpop.f32.mrb[0].mxu0
    %v1843 = vadd.f32 %v343, %v1842
    %v1844 = vpop.f32.mrb[0].mxu0
    %v1845 = vadd.f32 %v347, %v1844
    %v1846 = vpop.f32.mrb[0].mxu0
    %v1847 = vpop.f32.mrb[0].mxu0
    %1848 = vdwg.mxu0
    %1849 = vmatprep.subr.bf16.mxu0 %v1265
    %1850 = vmatpush1.bf16.msra.mxu0 %v1264
    %1851 = vmatprep.subr.bf16.mxu0 %v1273
    %1852 = vmatpush1.bf16.msra.mxu0 %v1272
    %1853 = vmatprep.subr.bf16.mxu0 %v1281
    %1854 = vmatpush1.bf16.msra.mxu0 %v1280
    %1855 = vmatprep.subr.bf16.mxu0 %v1289
    %1856 = vmatpush1.bf16.msra.mxu0 %v1288
    %1857 = vmatprep.subr.bf16.mxu0 %v1297
    %1858 = vmatpush1.bf16.msra.mxu0 %v1296
    %1859 = vmatprep.subr.bf16.mxu0 %v1305
    %1860 = vmatpush1.bf16.msra.mxu0 %v1304
    %1861 = vmatprep.subr.bf16.mxu0 %v1313
    %1862 = vmatpush1.bf16.msra.mxu0 %v1312
    %1863 = vmatprep.subr.bf16.mxu0 %v1321
    %1864 = vmatpush1.bf16.msra.mxu0 %v1320
    %1865 = vmatprep.subr.bf16.mxu0 %v1329
    %1866 = vmatpush1.bf16.msra.mxu0 %v1328
    %1867 = vmatprep.subr.bf16.mxu0 %v1337
    %1868 = vmatpush1.bf16.msra.mxu0 %v1336
    %1869 = vmatprep.subr.bf16.mxu0 %v1345
    %1870 = vmatpush1.bf16.msra.mxu0 %v1344
    %1871 = vmatprep.subr.bf16.mxu0 %v1353
    %1872 = vmatpush1.bf16.msra.mxu0 %v1352
    %1873 = vmatprep.subr.bf16.mxu0 %v1361
    %1874 = vmatpush1.bf16.msra.mxu0 %v1360
    %1875 = vmatprep.subr.bf16.mxu0 %v1369
    %1876 = vmatpush1.bf16.msra.mxu0 %v1368
    %1877 = vmatprep.subr.bf16.mxu0 %v1377
    %1878 = vmatpush1.bf16.msra.mxu0 %v1376
    %1879 = vmatprep.subr.bf16.mxu0 %v1385
    %1880 = vmatpush1.bf16.msra.mxu0 %v1384
    %1881 = vmatprep.mubr.bf16.mxu0 %v65
    %1882 = vmatmul.mubr.bf16.gmra.mrb[0].mxu0 %v64
    %v1883 = vpop.f32.mrb[0].mxu0
    %v1884 = vadd.f32 %v1843, %v1883
    %v1885 = vpop.f32.mrb[0].mxu0
    %v1886 = vadd.f32 %v1845, %v1885
    %v1887 = vpop.f32.mrb[0].mxu0
    %v1888 = vpop.f32.mrb[0].mxu0
    %1889 = vdwg.mxu0
    %1890 = vmatprep.subr.bf16.mxu0 %v1139
    %1891 = vmatpush1.bf16.msra.mxu0 %v1138
    %1892 = vmatprep.subr.bf16.mxu0 %v1147
    %1893 = vmatpush1.bf16.msra.mxu0 %v1146
    %1894 = vmatprep.subr.bf16.mxu0 %v1155
    %1895 = vmatpush1.bf16.msra.mxu0 %v1154
    %1896 = vmatprep.subr.bf16.mxu0 %v1163
    %1897 = vmatpush1.bf16.msra.mxu0 %v1162
    %1898 = vmatprep.subr.bf16.mxu0 %v1171
    %1899 = vmatpush1.bf16.msra.mxu0 %v1170
    %1900 = vmatprep.subr.bf16.mxu0 %v1179
    %1901 = vmatpush1.bf16.msra.mxu0 %v1178
    %1902 = vmatprep.subr.bf16.mxu0 %v1187
    %1903 = vmatpush1.bf16.msra.mxu0 %v1186
    %1904 = vmatprep.subr.bf16.mxu0 %v1195
    %1905 = vmatpush1.bf16.msra.mxu0 %v1194
    %1906 = vmatprep.subr.bf16.mxu0 %v1203
    %1907 = vmatpush1.bf16.msra.mxu0 %v1202
    %1908 = vmatprep.subr.bf16.mxu0 %v1211
    %1909 = vmatpush1.bf16.msra.mxu0 %v1210
    %1910 = vmatprep.subr.bf16.mxu0 %v1219
    %1911 = vmatpush1.bf16.msra.mxu0 %v1218
    %1912 = vmatprep.subr.bf16.mxu0 %v1227
    %1913 = vmatpush1.bf16.msra.mxu0 %v1226
    %1914 = vmatprep.subr.bf16.mxu0 %v1235
    %1915 = vmatpush1.bf16.msra.mxu0 %v1234
    %1916 = vmatprep.subr.bf16.mxu0 %v1243
    %1917 = vmatpush1.bf16.msra.mxu0 %v1242
    %1918 = vmatprep.subr.bf16.mxu0 %v1251
    %1919 = vmatpush1.bf16.msra.mxu0 %v1250
    %1920 = vmatprep.subr.bf16.mxu0 %v1259
    %1921 = vmatpush1.bf16.msra.mxu0 %v1258
    %1922 = vmatprep.mubr.bf16.mxu0 %v63
    %1923 = vmatmul.mubr.bf16.gmra.mrb[0].mxu0 %v62
    %v1924 = vpop.f32.mrb[0].mxu0
    %v1925 = vadd.f32 %v351, %v1924
    %v1926 = vpop.f32.mrb[0].mxu0
    %v1927 = vadd.f32 %v355, %v1926
    %v1928 = vpop.f32.mrb[0].mxu0
    %v1929 = vpop.f32.mrb[0].mxu0
    %1930 = vdwg.mxu0
    %1931 = vmatprep.subr.bf16.mxu0 %v1267
    %1932 = vmatpush1.bf16.msra.mxu0 %v1266
    %1933 = vmatprep.subr.bf16.mxu0 %v1275
    %1934 = vmatpush1.bf16.msra.mxu0 %v1274
    %1935 = vmatprep.subr.bf16.mxu0 %v1283
    %1936 = vmatpush1.bf16.msra.mxu0 %v1282
    %1937 = vmatprep.subr.bf16.mxu0 %v1291
    %1938 = vmatpush1.bf16.msra.mxu0 %v1290
    %1939 = vmatprep.subr.bf16.mxu0 %v1299
    %1940 = vmatpush1.bf16.msra.mxu0 %v1298
    %1941 = vmatprep.subr.bf16.mxu0 %v1307
    %1942 = vmatpush1.bf16.msra.mxu0 %v1306
    %1943 = vmatprep.subr.bf16.mxu0 %v1315
    %1944 = vmatpush1.bf16.msra.mxu0 %v1314
    %1945 = vmatprep.subr.bf16.mxu0 %v1323
    %1946 = vmatpush1.bf16.msra.mxu0 %v1322
    %1947 = vmatprep.subr.bf16.mxu0 %v1331
    %1948 = vmatpush1.bf16.msra.mxu0 %v1330
    %1949 = vmatprep.subr.bf16.mxu0 %v1339
    %1950 = vmatpush1.bf16.msra.mxu0 %v1338
    %1951 = vmatprep.subr.bf16.mxu0 %v1347
    %1952 = vmatpush1.bf16.msra.mxu0 %v1346
    %1953 = vmatprep.subr.bf16.mxu0 %v1355
    %1954 = vmatpush1.bf16.msra.mxu0 %v1354
    %1955 = vmatprep.subr.bf16.mxu0 %v1363
    %1956 = vmatpush1.bf16.msra.mxu0 %v1362
    %1957 = vmatprep.subr.bf16.mxu0 %v1371
    %1958 = vmatpush1.bf16.msra.mxu0 %v1370
    %1959 = vmatprep.subr.bf16.mxu0 %v1379
    %1960 = vmatpush1.bf16.msra.mxu0 %v1378
    %1961 = vmatprep.subr.bf16.mxu0 %v1387
    %1962 = vmatpush1.bf16.msra.mxu0 %v1386
    %1963 = vmatprep.mubr.bf16.mxu0 %v65
    %1964 = vmatmul.mubr.bf16.gmra.mrb[0].mxu0 %v64
    %v1965 = vpop.f32.mrb[0].mxu0
    %v1966 = vadd.f32 %v1925, %v1965
    %v1967 = vpop.f32.mrb[0].mxu0
    %v1968 = vadd.f32 %v1927, %v1967
    %v1969 = vpop.f32.mrb[0].mxu0
    %v1970 = vpop.f32.mrb[0].mxu0
    %1971 = vdwg.mxu0
    %v1972 = vmax.f32 %v1720, 0.0
    %v1973 = vmax.f32 %v1722, 0.0
    %v1974 = vmax.f32 %v1802, 0.0
    %v1975 = vmax.f32 %v1804, 0.0
    %v1976 = vmax.f32 %v1884, 0.0
    %v1977 = vmax.f32 %v1886, 0.0
    %v1978 = vmax.f32 %v1966, 0.0
    %v1979 = vmax.f32 %v1968, 0.0
    %v1980 = vld [vmem:[#allocation7] sm:$0xff]
    %v1982 = vlaneseq
    %v1983 = vshrl.u32 %v1982, 7
    %v1984 = vsub.s32 0, %v1983
    %v1985 = vrot.slane %v1980, %v1984
    %v1986 = vlaneseq
    %v1987 = vshrl.u32 %v1986, 7
    %v1988 = vsub.s32 1, %v1987
    %v1989 = vrot.slane %v1980, %v1988
    %v1990 = vlaneseq
    %v1991 = vshrl.u32 %v1990, 7
    %v1992 = vsub.s32 2, %v1991
    %v1993 = vrot.slane %v1980, %v1992
    %v1994 = vlaneseq
    %v1995 = vshrl.u32 %v1994, 7
    %v1996 = vsub.s32 3, %v1995
    %v1997 = vrot.slane %v1980, %v1996
    %v1998 = vlaneseq
    %v1999 = vshrl.u32 %v1998, 7
    %v2000 = vsub.s32 4, %v1999
    %v2001 = vrot.slane %v1980, %v2000
    %v2002 = vlaneseq
    %v2003 = vshrl.u32 %v2002, 7
    %v2004 = vsub.s32 5, %v2003
    %v2005 = vrot.slane %v1980, %v2004
    %v2006 = vlaneseq
    %v2007 = vshrl.u32 %v2006, 7
    %v2008 = vsub.s32 6, %v2007
    %v2009 = vrot.slane %v1980, %v2008
    %v2010 = vlaneseq
    %v2011 = vshrl.u32 %v2010, 7
    %v2012 = vsub.s32 7, %v2011
    %v2013 = vrot.slane %v1980, %v2012
    %v2022 = vmul.f32 %v1972, %v1985
    %v2023 = vmul.f32 %v1973, %v1989
    %v2024 = vmul.f32 %v1974, %v1993
    %v2025 = vmul.f32 %v1975, %v1997
    %v2026 = vmul.f32 %v1976, %v2001
    %v2027 = vmul.f32 %v1977, %v2005
    %v2028 = vmul.f32 %v1978, %v2009
    %v2029 = vmul.f32 %v1979, %v2013
    %v2030 = vadd.f32 %v2022, %v2023
    %v2031 = vadd.f32 %v2030, %v2024
    %v2032 = vadd.f32 %v2031, %v2025
    %v2033 = vadd.f32 %v2032, %v2026
    %v2034 = vadd.f32 %v2033, %v2027
    %v2035 = vadd.f32 %v2034, %v2028
    %v2036 = vadd.f32 %v2035, %v2029
    %2037 = vadd.xlane.f32.xlu0 %v2036
    %v2038 = vpop.xlane.xlu0 %2037
    %s2039 = sld [smem:[#allocation2]]
    %v2040 = vstv %s2039
    %v2041 = vadd.f32 %v2038, %v2040
    %v2042 = vsub.f32 0.0, %v2041
    %v2043 = vmul.f32 %v2042, 1.442695
    %v2044 = vpow.pop %v2043
    %v2045 = vadd.f32 %v2044, 1.0
    %v2046 = vrcp.pop %v2045
    %v2047 = vmul.f32 1.0, %v2046
    %vm2048 = vcmask 7168
    %2049 = vst.msk [vmem:[%s5] sm:$0xff] %vm2048, %v2047
    // Predicated region
    $region34: #{tpu_custom_call.1} parent=1 // pred_check
      _
    $region35: #{tpu_custom_call.1} parent=1 // pred_check_branch
      %2051 = sbr.rel (0) target = $region37
    $region36: #{tpu_custom_call.1} parent=1 // pred_region
      _
    $region37: #{tpu_custom_call.1} parent=1 // pred_fallthru
      _
    // Predicated region
    $region38: #{tpu_custom_call.1} parent=1 // pred_check
      _
    $region39: #{tpu_custom_call.1} parent=1 // pred_check_branch
      %2053 = sbr.rel (0) target = $region41
    $region40: #{tpu_custom_call.1} parent=1 // pred_region
      _
    $region41: #{tpu_custom_call.1} parent=1 // pred_fallthru
      _
    %2054 = vsyncpa [#allocation4], 1
    %2055 = vsyncpa [#allocation6], 1

</llo_original>
